<compile_context>
chip_gen: v6e
topology: v6e:2x2x1
jax: 0.10.0
libtpu: 0.0.40
codegen_flags: <defaults>
</compile_context>

<pallas_src>
import jax
import jax.numpy as jnp
from jax.experimental import pallas as pl
from jax.experimental.pallas import tpu as pltpu

N = 49              # number of graph nodes (fixed by fc in_features=49)
N_PAD = 64          # nodes padded to a multiple of 8 (sublane / contraction dim)
F_PAD = 8           # tiny feature dims (1, 3) padded to 8
GROUP = 8           # samples processed per grid step (fills FC LHS M-dim)
FC_OUT = 2500
FC_OUT_PAD = 2560   # 20 * 128 (lane-dense output)


# ----------------------------- Pallas kernel --------------------------------
def gcn_fc_kernel(x_ref, a_ref, w1_ref, b1_ref, w2_ref, b2_ref,
                  wfc_ref, bfc_ref, o_ref):
    a = a_ref[...]                                                    # [64, 64]
    xg = x_ref[...]                                                   # [8, 64]  (samples x nodes)

    # AX[n, s] = sum_m A[n, m] * X[s, m]
    ax = jax.lax.dot_general(a, xg, (((1,), (1,)), ((), ())),
                             preferred_element_type=jnp.float32)      # [64, 8]

    # GCN layer 1 for all 8 samples at once via block-replicated W1.
    # h1[n, s*8+f] = tanh(ax[n, s] * W1[0, f] + b1[f])
    h1 = jnp.tanh(
        jnp.dot(ax, w1_ref[...], preferred_element_type=jnp.float32)
        + b1_ref[...])                                                # [64, 64]

    # GCN layer 2: A_hat @ h1, then contract the per-sample feature block
    # with block-replicated W2.
    ah = jnp.dot(a, h1, preferred_element_type=jnp.float32)           # [64, 64]
    h2 = jnp.tanh(
        jnp.dot(ah, w2_ref[...], preferred_element_type=jnp.float32)
        + b2_ref[...])                                                # [64, 8]

    # fc: contract over the node axis; each of the 8 LHS rows is a real sample.
    # Padded node rows 49..63 of h2 are tanh(b2) != 0 but wfc rows 49..63 are
    # zero-padded, so they contribute nothing.
    fc = jax.lax.dot_general(h2, wfc_ref[...], (((0,), (0,)), ((), ())),
                             preferred_element_type=jnp.float32)      # [8, 2560]
    o_ref[...] = fc + bfc_ref[...]


# ----------------------------- plain-JAX glue --------------------------------
def build_norm_adj(edge_index, num_nodes):
    """Dense A_hat = D^-1/2 (A + I) D^-1/2 matching PyG gcn_norm semantics."""
    src, dst = edge_index[0], edge_index[1]
    loop = jnp.arange(num_nodes, dtype=edge_index.dtype)
    src = jnp.concatenate([src, loop])
    dst = jnp.concatenate([dst, loop])
    adj = jnp.zeros((num_nodes, num_nodes), jnp.float32).at[dst, src].add(1.0)
    deg = adj.sum(axis=1)
    dinv = jnp.where(deg > 0, 1.0 / jnp.sqrt(deg), 0.0)
    return dinv[:, None] * adj * dinv[None, :]


def _pad2(x, rows, cols):
    return jnp.zeros((rows, cols), x.dtype).at[: x.shape[0], : x.shape[1]].set(x)


def prepare_model(params, edge_index):
    """One-time setup: A_hat + padded / block-replicated weights (off the per-call path)."""
    a_hat = build_norm_adj(edge_index, N)
    eye = jnp.eye(GROUP, dtype=jnp.float32)
    w1_pad = _pad2(params["W1"], 1, F_PAD)                  # [1, 8]
    w2_pad = _pad2(params["W2"], F_PAD, 1)                  # [8, 1]
    b1_pad = _pad2(params["b1"][None, :], 1, F_PAD)         # [1, 8]
    prep = {
        "a":   _pad2(a_hat, N_PAD, N_PAD),                  # [64, 64]
        "w1":  jnp.kron(eye, w1_pad),                       # [8, 64]  block-diag W1
        "b1":  jnp.tile(b1_pad, (1, GROUP)),                # [1, 64]
        "w2":  jnp.kron(eye, w2_pad),                       # [64, 8]  block-diag W2
        "b2":  jnp.full((1, GROUP), params["b2"][0], jnp.float32),   # [1, 8]
        "wfc": _pad2(params["Wfc"].T, N_PAD, FC_OUT_PAD),   # [49,2500] -> [64,2560]
        "bfc": _pad2(params["bfc"][None, :], 1, FC_OUT_PAD) # [1, 2560]
    }
    return jax.tree_util.tree_map(jax.device_put, prep)


@jax.jit
def mymodel_forward(features, prep):
    """features: [B, 49, 1] -> [B, 2500]; row b == MyModel.forward(sample b)."""
    B = features.shape[0]
    b_pad = ((B + GROUP - 1) // GROUP) * GROUP
    n_groups = b_pad // GROUP

    # single tiny per-call pad: [B, 49, 1] -> [B_pad, 64]  (samples x nodes)
    xg = jnp.zeros((b_pad, N_PAD), jnp.float32).at[:B, :N].set(features[:, :, 0])

    const = lambda g: (0, 0)

    flops = 2 * n_groups * (
        N_PAD * N_PAD * GROUP                      # A @ X^T
        + N_PAD * GROUP * GROUP * F_PAD            # ax @ W1_block
        + N_PAD * N_PAD * GROUP * F_PAD            # A @ h1
        + N_PAD * GROUP * F_PAD * GROUP            # ah @ W2_block
        + GROUP * N_PAD * FC_OUT_PAD)              # fc
    transcendentals = n_groups * (N_PAD * GROUP * F_PAD + N_PAD * GROUP)
    bytes_accessed = 4 * (
        N_PAD * N_PAD + GROUP * GROUP * F_PAD + GROUP * F_PAD
        + GROUP * F_PAD * GROUP + GROUP + N_PAD * FC_OUT_PAD + FC_OUT_PAD
        + b_pad * N_PAD + b_pad * FC_OUT_PAD)

    out_p = pl.pallas_call(
        gcn_fc_kernel,
        out_shape=jax.ShapeDtypeStruct((b_pad, FC_OUT_PAD), jnp.float32),
        grid=(n_groups,),
        in_specs=[
            pl.BlockSpec((GROUP, N_PAD), lambda g: (g, 0)),   # features (per step)
            pl.BlockSpec((N_PAD, N_PAD), const),              # A_hat   (VMEM-resident)
            pl.BlockSpec((GROUP, GROUP * F_PAD), const),      # W1 block
            pl.BlockSpec((1, GROUP * F_PAD), const),          # b1
            pl.BlockSpec((GROUP * F_PAD, GROUP), const),      # W2 block
            pl.BlockSpec((1, GROUP), const),                  # b2
            pl.BlockSpec((N_PAD, FC_OUT_PAD), const),         # Wfc.T  (VMEM-resident)
            pl.BlockSpec((1, FC_OUT_PAD), const),             # bfc
        ],
        out_specs=pl.BlockSpec((GROUP, FC_OUT_PAD), lambda g: (g, 0)),
        compiler_params=pltpu.CompilerParams(
            dimension_semantics=("parallel",)),
        cost_estimate=pl.CostEstimate(flops=flops,
                                      transcendentals=transcendentals,
                                      bytes_accessed=bytes_accessed),
    )(xg, prep["a"], prep["w1"], prep["b1"], prep["w2"], prep["b2"],
      prep["wfc"], prep["bfc"])

    return out_p[:B, :FC_OUT]


def reference_forward_single(feature, a_hat, params):
    h1 = jnp.tanh(a_hat @ feature @ params["W1"] + params["b1"])
    h2 = jnp.tanh(a_hat @ h1 @ params["W2"] + params["b2"])
    f = jnp.squeeze(h2)                                # [49]
    return f @ params["Wfc"].T + params["bfc"]         # [2500]


# ----------------------------------- main ------------------------------------
if __name__ == "__main__":
    key = jax.random.PRNGKey(0)
    keys = jax.random.split(key, 8)

    # deterministic synthetic parameters (GCNConv weight = [in,out], Linear = [out,in])
    params = {
        "W1": jax.random.normal(keys[0], (1, 3), jnp.float32) * 0.5,
        "b1": jax.random.normal(keys[1], (3,), jnp.float32) * 0.1,
        "W2": jax.random.normal(keys[2], (3, 1), jnp.float32) * 0.5,
        "b2": jax.random.normal(keys[3], (1,), jnp.float32) * 0.1,
        "Wfc": jax.random.normal(keys[4], (FC_OUT, N), jnp.float32) / jnp.sqrt(N),
        "bfc": jax.random.normal(keys[5], (FC_OUT,), jnp.float32) * 0.1,
    }

    # batch of node-feature matrices [B, 49, 1] (B not a multiple of 8 on purpose)
    B = 20
    features = jax.random.normal(keys[6], (B, N, 1), jnp.float32)

    # simple undirected ring graph over 49 nodes: edge_index [2, 98]
    idx = jnp.arange(N, dtype=jnp.int32)
    nxt = (idx + 1) % N
    edge_index = jnp.stack([
        jnp.concatenate([idx, nxt]),
        jnp.concatenate([nxt, idx]),
    ], axis=0)

    # one-time prep (A_hat + all weight padding / block replication)
    prep = jax.block_until_ready(prepare_model(params, edge_index))

    out = jax.block_until_ready(mymodel_forward(features, prep))

    a_hat = build_norm_adj(edge_index, N)
    ref = jax.block_until_ready(
        jax.vmap(lambda f: reference_forward_single(f, a_hat, params))(features))

    assert out.shape == (B, FC_OUT), out.shape
    assert jnp.allclose(out, ref, atol=1e-4, rtol=1e-4), \
        f"max abs err = {jnp.max(jnp.abs(out - ref))}"
    print("KERNEL_OK")
</pallas_src>

<mosaic_0001>
module attributes {stable_mosaic.version = 11 : i64} {
  func.func @gcn_fc_kernel(%arg0: i32, %arg1: memref<8x64xf32, #tpu.memory_space<vmem>>, %arg2: memref<64x64xf32, #tpu.memory_space<vmem>>, %arg3: memref<8x64xf32, #tpu.memory_space<vmem>>, %arg4: memref<1x64xf32, #tpu.memory_space<vmem>>, %arg5: memref<64x8xf32, #tpu.memory_space<vmem>>, %arg6: memref<1x8xf32, #tpu.memory_space<vmem>>, %arg7: memref<64x2560xf32, #tpu.memory_space<vmem>>, %arg8: memref<1x2560xf32, #tpu.memory_space<vmem>>, %arg9: memref<8x2560xf32, #tpu.memory_space<vmem>>) attributes {dimension_semantics = [#tpu.dimension_semantics<parallel>], iteration_bounds = array<i64: 3>, scalar_prefetch = 0 : i64, scratch_operands = 0 : i64, tpu.core_type = #tpu.core_type<tc>, window_params = [{transform_indices = @transform_0, window_bounds = array<i64: 8, 64>}, {pipeline_mode = #tpu.pipeline_mode<synchronous>, transform_indices = @transform_1, window_bounds = array<i64: 64, 64>}, {pipeline_mode = #tpu.pipeline_mode<synchronous>, transform_indices = @transform_2, window_bounds = array<i64: 8, 64>}, {pipeline_mode = #tpu.pipeline_mode<synchronous>, transform_indices = @transform_3, window_bounds = array<i64: 1, 64>}, {pipeline_mode = #tpu.pipeline_mode<synchronous>, transform_indices = @transform_4, window_bounds = array<i64: 64, 8>}, {pipeline_mode = #tpu.pipeline_mode<synchronous>, transform_indices = @transform_5, window_bounds = array<i64: 1, 8>}, {pipeline_mode = #tpu.pipeline_mode<synchronous>, transform_indices = @transform_6, window_bounds = array<i64: 64, 2560>}, {pipeline_mode = #tpu.pipeline_mode<synchronous>, transform_indices = @transform_7, window_bounds = array<i64: 1, 2560>}, {transform_indices = @transform_8, window_bounds = array<i64: 8, 2560>}]} {
    %c0 = arith.constant 0 : index
    %c0_0 = arith.constant 0 : index
    %0 = vector.load %arg2[%c0, %c0_0] : memref<64x64xf32, #tpu.memory_space<vmem>>, vector<64x64xf32>
    %c0_1 = arith.constant 0 : index
    %c0_2 = arith.constant 0 : index
    %1 = vector.load %arg1[%c0_1, %c0_2] : memref<8x64xf32, #tpu.memory_space<vmem>>, vector<8x64xf32>
    %cst = arith.constant dense<0.000000e+00> : vector<64x8xf32>
    %2 = tpu.matmul %0, %1, %cst {dimension_numbers = #tpu.dot_dimension_numbers<[1], [1], [0], [0], [0, 0, 1, 0], [], []>} : vector<64x64xf32>, vector<8x64xf32>, vector<64x8xf32> -> vector<64x8xf32>
    %c0_3 = arith.constant 0 : index
    %c0_4 = arith.constant 0 : index
    %3 = vector.load %arg3[%c0_3, %c0_4] : memref<8x64xf32, #tpu.memory_space<vmem>>, vector<8x64xf32>
    %cst_5 = arith.constant dense<0.000000e+00> : vector<64x64xf32>
    %4 = tpu.matmul %2, %3, %cst_5 {dimension_numbers = #tpu.dot_dimension_numbers<[1], [0], [0], [1], [0, 0, 1, 1], [], []>} : vector<64x8xf32>, vector<8x64xf32>, vector<64x64xf32> -> vector<64x64xf32>
    %c0_6 = arith.constant 0 : index
    %c0_7 = arith.constant 0 : index
    %5 = vector.load %arg4[%c0_6, %c0_7] : memref<1x64xf32, #tpu.memory_space<vmem>>, vector<1x64xf32>
    %6 = vector.broadcast %5 : vector<1x64xf32> to vector<64x64xf32>
    %7 = arith.addf %4, %6 : vector<64x64xf32>
    %8 = math.tanh %7 : vector<64x64xf32>
    %cst_8 = arith.constant dense<0.000000e+00> : vector<64x64xf32>
    %9 = tpu.matmul %0, %8, %cst_8 {dimension_numbers = #tpu.dot_dimension_numbers<[1], [0], [0], [1], [0, 0, 1, 1], [], []>} : vector<64x64xf32>, vector<64x64xf32>, vector<64x64xf32> -> vector<64x64xf32>
    %c0_9 = arith.constant 0 : index
    %c0_10 = arith.constant 0 : index
    %10 = vector.load %arg5[%c0_9, %c0_10] : memref<64x8xf32, #tpu.memory_space<vmem>>, vector<64x8xf32>
    %cst_11 = arith.constant dense<0.000000e+00> : vector<64x8xf32>
    %11 = tpu.matmul %9, %10, %cst_11 {dimension_numbers = #tpu.dot_dimension_numbers<[1], [0], [0], [1], [0, 0, 1, 1], [], []>} : vector<64x64xf32>, vector<64x8xf32>, vector<64x8xf32> -> vector<64x8xf32>
    %c0_12 = arith.constant 0 : index
    %c0_13 = arith.constant 0 : index
    %12 = vector.load %arg6[%c0_12, %c0_13] : memref<1x8xf32, #tpu.memory_space<vmem>>, vector<1x8xf32>
    %13 = vector.broadcast %12 : vector<1x8xf32> to vector<64x8xf32>
    %14 = arith.addf %11, %13 : vector<64x8xf32>
    %15 = math.tanh %14 : vector<64x8xf32>
    %c0_14 = arith.constant 0 : index
    %c0_15 = arith.constant 0 : index
    %16 = vector.load %arg7[%c0_14, %c0_15] : memref<64x2560xf32, #tpu.memory_space<vmem>>, vector<64x2560xf32>
    %cst_16 = arith.constant dense<0.000000e+00> : vector<8x2560xf32>
    %17 = tpu.matmul %15, %16, %cst_16 {dimension_numbers = #tpu.dot_dimension_numbers<[0], [0], [1], [1], [0, 1, 1, 1], [], []>} : vector<64x8xf32>, vector<64x2560xf32>, vector<8x2560xf32> -> vector<8x2560xf32>
    %c0_17 = arith.constant 0 : index
    %c0_18 = arith.constant 0 : index
    %18 = vector.load %arg8[%c0_17, %c0_18] : memref<1x2560xf32, #tpu.memory_space<vmem>>, vector<1x2560xf32>
    %19 = vector.broadcast %18 : vector<1x2560xf32> to vector<8x2560xf32>
    %20 = arith.addf %17, %19 : vector<8x2560xf32>
    %c0_19 = arith.constant 0 : index
    %c0_20 = arith.constant 0 : index
    %21 = vector.load %arg9[%c0_19, %c0_20] : memref<8x2560xf32, #tpu.memory_space<vmem>>, vector<8x2560xf32>
    tpu.vector_store %arg9[%c0_19, %c0_20], %20 {strides = array<i32>} : memref<8x2560xf32, #tpu.memory_space<vmem>>, vector<8x2560xf32>,
    return
  }
  func.func @transform_0(%arg0: i32) -> (i32, i32) {
    %c0_i32 = arith.constant 0 : i32
    %c0_i32_0 = arith.constant 0 : i32
    return %arg0, %c0_i32 : i32, i32
  }
  func.func @transform_1(%arg0: i32) -> (i32, i32) {
    %c0_i32 = arith.constant 0 : i32
    %c0_i32_0 = arith.constant 0 : i32
    %c0_i32_1 = arith.constant 0 : i32
    return %c0_i32, %c0_i32_0 : i32, i32
  }
  func.func @transform_2(%arg0: i32) -> (i32, i32) {
    %c0_i32 = arith.constant 0 : i32
    %c0_i32_0 = arith.constant 0 : i32
    %c0_i32_1 = arith.constant 0 : i32
    return %c0_i32, %c0_i32_0 : i32, i32
  }
  func.func @transform_3(%arg0: i32) -> (i32, i32) {
    %c0_i32 = arith.constant 0 : i32
    %c0_i32_0 = arith.constant 0 : i32
    %c0_i32_1 = arith.constant 0 : i32
    return %c0_i32, %c0_i32_0 : i32, i32
  }
  func.func @transform_4(%arg0: i32) -> (i32, i32) {
    %c0_i32 = arith.constant 0 : i32
    %c0_i32_0 = arith.constant 0 : i32
    %c0_i32_1 = arith.constant 0 : i32
    return %c0_i32, %c0_i32_0 : i32, i32
  }
  func.func @transform_5(%arg0: i32) -> (i32, i32) {
    %c0_i32 = arith.constant 0 : i32
    %c0_i32_0 = arith.constant 0 : i32
    %c0_i32_1 = arith.constant 0 : i32
    return %c0_i32, %c0_i32_0 : i32, i32
  }
  func.func @transform_6(%arg0: i32) -> (i32, i32) {
    %c0_i32 = arith.constant 0 : i32
    %c0_i32_0 = arith.constant 0 : i32
    %c0_i32_1 = arith.constant 0 : i32
    return %c0_i32, %c0_i32_0 : i32, i32
  }
  func.func @transform_7(%arg0: i32) -> (i32, i32) {
    %c0_i32 = arith.constant 0 : i32
    %c0_i32_0 = arith.constant 0 : i32
    %c0_i32_1 = arith.constant 0 : i32
    return %c0_i32, %c0_i32_0 : i32, i32
  }
  func.func @transform_8(%arg0: i32) -> (i32, i32) {
    %c0_i32 = arith.constant 0 : i32
    %c0_i32_0 = arith.constant 0 : i32
    return %arg0, %c0_i32 : i32, i32
  }
}

</mosaic_0001>

<llo_original>
// kernel: mymodel_forward.1
$region0: #{mymodel_forward.1}
  #allocation0 [shape = 'u32[]', space=smem, size = 0x4, offset = 0x4, fixed_abs, tag = 'smem constant byte address 0x4 - core index']
  #allocation1 [shape = 'u32[144,128]{1,0:T(1,128)}', space=vmem, size = 0x12000, scoped, tag = 'internal scratch']
  %s0 = inlined_call_operand.vmem [shape: f32[24,64], index: 0, kind: input, shape index: {}]
  %s1 = inlined_call_operand.vmem [shape: f32[64,64], index: 1, kind: input, shape index: {}]
  %s2 = inlined_call_operand.vmem [shape: f32[8,64], index: 2, kind: input, shape index: {}]
  %s3 = inlined_call_operand.vmem [shape: f32[1,64], index: 3, kind: input, shape index: {}]
  %s4 = inlined_call_operand.vmem [shape: f32[64,8], index: 4, kind: input, shape index: {}]
  %s5 = inlined_call_operand.vmem [shape: f32[1,8], index: 5, kind: input, shape index: {}]
  %s6 = inlined_call_operand.hbm [shape: f32[64,2560], index: 6, kind: input, shape index: {}]
  %s7 = inlined_call_operand.vmem [shape: f32[1,2560], index: 7, kind: input, shape index: {}]
  %s8 = inlined_call_operand.hbm [shape: f32[24,2560], index: 8, kind: output, shape index: {}]
  %s9 = sld [smem:[#allocation0]]
  $region69: #{mymodel_forward.1} parent=0
    _
  %s11 = ssub.s32 1, %s9
  %s12 = scalar_select 0, %s11, %s9
  $region1: #{mymodel_forward.1} parent=0
    #allocation2 [shape = 'u8[655360]{0}', space=vmem, size = 0xa0000, scoped, tag = 'input window, operand 6, single buffered']
    #allocation3 [shape = 's32[2]{0}', space=sflag, size = 0x8, scoped, tag = 'scoped memory for mymodel_forward.1']
    #allocation4 [shape = 's32[2]{0}', space=sflag, size = 0x8, scoped, tag = 'scoped memory for mymodel_forward.1']
    #allocation5 [shape = 'u8[163840]{0}', space=vmem, size = 0x28000, scoped, tag = 'output window, operand 0']
    %13 = vsyncpa [#allocation3], 0
    %14 = vsyncpa [#allocation4], 0
    %s15 = scalar_lea.sflag [#allocation4], 1
    %16 = vsyncpa %s15, 0
    loop: start=0, step=1, limit=5
    $region2: #{mymodel_forward.1} parent=1 // loop_pre_header
      _
    $region3: #{mymodel_forward.1} parent=1 // loop_header
      %s18 = sphi 0, %s22
      %p19 = scmp.ge.s32.totalorder %s18, 5
      %s28 = sphi 0, %s30
      %s31 = sphi 0, %s28
      %s32 = sphi 0, %s31
      %s48 = sphi 0, %s32
      %s52 = sphi 0, %s52
      %s54 = sphi 0, %s52
      %s55 = sphi 0, %s54
      %s69 = sphi 0, %s55
      %s73 = sphi 0, %s73
      %s75 = sphi 0, %s73
      %s76 = sphi 0, %s75
      %s90 = sphi 0, %s76
      %s94 = sphi 0, %s94
      %s96 = sphi 0, %s94
      %s97 = sphi 0, %s96
      %s111 = sphi 0, %s97
      %s115 = sphi 0, %s115
      %s117 = sphi 0, %s115
      %s118 = sphi 0, %s117
      %s132 = sphi 0, %s118
      %s136 = sphi 0, %s136
      %s138 = sphi 0, %s136
      %s139 = sphi 0, %s138
      %s153 = sphi 0, %s139
      %s157 = sphi 0, %s157
      %s159 = sphi 0, %s157
      %s160 = sphi 0, %s159
      %s174 = sphi 0, %s160
      %s178 = sphi 0, %s178
      %s180 = sphi 0, %s178
      %s181 = sphi 0, %s180
      %s195 = sphi 0, %s181
      %s201 = sphi 0, %s203
      %s204 = sphi 0, %s201
      %s205 = sphi 0, %s204
      %s221 = sphi 0, %s205
    $region4: #{mymodel_forward.1} parent=1 // loop_header_branch
      %21 = sbr.rel (%p19) target = $region8
    $region5: #{mymodel_forward.1} parent=1 // loop_body
      %s23 = ssub.s32 %s18, 1
      %s24 = ssub.s32 %s18, 2
      %s25 = sadd.s32 %s18, 1
      %s26 = ssub.s32 %s18, %s25
      %p27 = scmp.eq.s32.totalorder %s26, 0
      %s29 = sadd.s32 %s28, 1
      %s30 = scalar_select %p27, %s28, %s29
      %p33 = pneg %p27
      %p34 = scmp.eq.s32.totalorder %s18, 2
      %p35 = por %p33, %p34
      %p36 = scmp.ne.s32.totalorder %s28, %s31
      %p37 = scmp.eq.s32.totalorder %s18, 0
      %p38 = por %p36, %p37
      %p39 = scmp.ne.s32.totalorder %s28, %s31
      %p40 = scmp.eq.s32.totalorder %s23, 2
      %p41 = por %p39, %p40
      %p42 = scmp.ne.s32.totalorder %s31, %s32
      %p43 = scmp.eq.s32.totalorder %s23, 0
      %p44 = por %p42, %p43
      %p45 = scmp.ne.s32.totalorder %s31, %s32
      %p46 = scmp.eq.s32.totalorder %s24, 2
      %p47 = por %p45, %p46
      %p49 = scmp.ne.s32.totalorder %s32, %s48
      %p50 = scmp.eq.s32.totalorder %s24, 0
      %p51 = por %p49, %p50
      %s53 = sadd.s32 %s52, 1
      %p56 = scmp.eq.s32.totalorder %s18, 2
      %p57 = scmp.ne.s32.totalorder %s52, %s54
      %p58 = scmp.eq.s32.totalorder %s18, 0
      %p59 = por %p57, %p58
      %p60 = scmp.ne.s32.totalorder %s52, %s54
      %p61 = scmp.eq.s32.totalorder %s23, 2
      %p62 = por %p60, %p61
      %p63 = scmp.ne.s32.totalorder %s54, %s55
      %p64 = scmp.eq.s32.totalorder %s23, 0
      %p65 = por %p63, %p64
      %p66 = scmp.ne.s32.totalorder %s54, %s55
      %p67 = scmp.eq.s32.totalorder %s24, 2
      %p68 = por %p66, %p67
      %p70 = scmp.ne.s32.totalorder %s55, %s69
      %p71 = scmp.eq.s32.totalorder %s24, 0
      %p72 = por %p70, %p71
      %s74 = sadd.s32 %s73, 1
      %p77 = scmp.eq.s32.totalorder %s18, 2
      %p78 = scmp.ne.s32.totalorder %s73, %s75
      %p79 = scmp.eq.s32.totalorder %s18, 0
      %p80 = por %p78, %p79
      %p81 = scmp.ne.s32.totalorder %s73, %s75
      %p82 = scmp.eq.s32.totalorder %s23, 2
      %p83 = por %p81, %p82
      %p84 = scmp.ne.s32.totalorder %s75, %s76
      %p85 = scmp.eq.s32.totalorder %s23, 0
      %p86 = por %p84, %p85
      %p87 = scmp.ne.s32.totalorder %s75, %s76
      %p88 = scmp.eq.s32.totalorder %s24, 2
      %p89 = por %p87, %p88
      %p91 = scmp.ne.s32.totalorder %s76, %s90
      %p92 = scmp.eq.s32.totalorder %s24, 0
      %p93 = por %p91, %p92
      %s95 = sadd.s32 %s94, 1
      %p98 = scmp.eq.s32.totalorder %s18, 2
      %p99 = scmp.ne.s32.totalorder %s94, %s96
      %p100 = scmp.eq.s32.totalorder %s18, 0
      %p101 = por %p99, %p100
      %p102 = scmp.ne.s32.totalorder %s94, %s96
      %p103 = scmp.eq.s32.totalorder %s23, 2
      %p104 = por %p102, %p103
      %p105 = scmp.ne.s32.totalorder %s96, %s97
      %p106 = scmp.eq.s32.totalorder %s23, 0
      %p107 = por %p105, %p106
      %p108 = scmp.ne.s32.totalorder %s96, %s97
      %p109 = scmp.eq.s32.totalorder %s24, 2
      %p110 = por %p108, %p109
      %p112 = scmp.ne.s32.totalorder %s97, %s111
      %p113 = scmp.eq.s32.totalorder %s24, 0
      %p114 = por %p112, %p113
      %s116 = sadd.s32 %s115, 1
      %p119 = scmp.eq.s32.totalorder %s18, 2
      %p120 = scmp.ne.s32.totalorder %s115, %s117
      %p121 = scmp.eq.s32.totalorder %s18, 0
      %p122 = por %p120, %p121
      %p123 = scmp.ne.s32.totalorder %s115, %s117
      %p124 = scmp.eq.s32.totalorder %s23, 2
      %p125 = por %p123, %p124
      %p126 = scmp.ne.s32.totalorder %s117, %s118
      %p127 = scmp.eq.s32.totalorder %s23, 0
      %p128 = por %p126, %p127
      %p129 = scmp.ne.s32.totalorder %s117, %s118
      %p130 = scmp.eq.s32.totalorder %s24, 2
      %p131 = por %p129, %p130
      %p133 = scmp.ne.s32.totalorder %s118, %s132
      %p134 = scmp.eq.s32.totalorder %s24, 0
      %p135 = por %p133, %p134
      %s137 = sadd.s32 %s136, 1
      %p140 = scmp.eq.s32.totalorder %s18, 2
      %p141 = scmp.ne.s32.totalorder %s136, %s138
      %p142 = scmp.eq.s32.totalorder %s18, 0
      %p143 = por %p141, %p142
      %p144 = scmp.ne.s32.totalorder %s136, %s138
      %p145 = scmp.eq.s32.totalorder %s23, 2
      %p146 = por %p144, %p145
      %p147 = scmp.ne.s32.totalorder %s138, %s139
      %p148 = scmp.eq.s32.totalorder %s23, 0
      %p149 = por %p147, %p148
      %p150 = scmp.ne.s32.totalorder %s138, %s139
      %p151 = scmp.eq.s32.totalorder %s24, 2
      %p152 = por %p150, %p151
      %p154 = scmp.ne.s32.totalorder %s139, %s153
      %p155 = scmp.eq.s32.totalorder %s24, 0
      %p156 = por %p154, %p155
      %s158 = sadd.s32 %s157, 1
      %p161 = scmp.eq.s32.totalorder %s18, 2
      %p162 = scmp.ne.s32.totalorder %s157, %s159
      %p163 = scmp.eq.s32.totalorder %s18, 0
      %p164 = por %p162, %p163
      %p165 = scmp.ne.s32.totalorder %s157, %s159
      %p166 = scmp.eq.s32.totalorder %s23, 2
      %p167 = por %p165, %p166
      %p168 = scmp.ne.s32.totalorder %s159, %s160
      %p169 = scmp.eq.s32.totalorder %s23, 0
      %p170 = por %p168, %p169
      %p171 = scmp.ne.s32.totalorder %s159, %s160
      %p172 = scmp.eq.s32.totalorder %s24, 2
      %p173 = por %p171, %p172
      %p175 = scmp.ne.s32.totalorder %s160, %s174
      %p176 = scmp.eq.s32.totalorder %s24, 0
      %p177 = por %p175, %p176
      %s179 = sadd.s32 %s178, 1
      %p182 = scmp.eq.s32.totalorder %s18, 2
      %p183 = scmp.ne.s32.totalorder %s178, %s180
      %p184 = scmp.eq.s32.totalorder %s18, 0
      %p185 = por %p183, %p184
      %p186 = scmp.ne.s32.totalorder %s178, %s180
      %p187 = scmp.eq.s32.totalorder %s23, 2
      %p188 = por %p186, %p187
      %p189 = scmp.ne.s32.totalorder %s180, %s181
      %p190 = scmp.eq.s32.totalorder %s23, 0
      %p191 = por %p189, %p190
      %p192 = scmp.ne.s32.totalorder %s180, %s181
      %p193 = scmp.eq.s32.totalorder %s24, 2
      %p194 = por %p192, %p193
      %p196 = scmp.ne.s32.totalorder %s181, %s195
      %p197 = scmp.eq.s32.totalorder %s24, 0
      %p198 = por %p196, %p197
      %s199 = ssub.s32 %s18, %s25
      %p200 = scmp.eq.s32.totalorder %s199, 0
      %s202 = sadd.s32 %s201, 1
      %s203 = scalar_select %p200, %s201, %s202
      %p206 = pneg %p200
      %p207 = scmp.eq.s32.totalorder %s18, 2
      %p208 = por %p206, %p207
      %p209 = scmp.ne.s32.totalorder %s201, %s204
      %p210 = scmp.eq.s32.totalorder %s18, 0
      %p211 = por %p209, %p210
      %p212 = scmp.ne.s32.totalorder %s201, %s204
      %p213 = scmp.eq.s32.totalorder %s23, 2
      %p214 = por %p212, %p213
      %p215 = scmp.ne.s32.totalorder %s204, %s205
      %p216 = scmp.eq.s32.totalorder %s23, 0
      %p217 = por %p215, %p216
      %p218 = scmp.ne.s32.totalorder %s204, %s205
      %p219 = scmp.eq.s32.totalorder %s24, 2
      %p220 = por %p218, %p219
      %p222 = scmp.ne.s32.totalorder %s205, %s221
      %p223 = scmp.eq.s32.totalorder %s24, 0
      %p224 = por %p222, %p223
      %p225 = scmp.le.s32.totalorder 1, %s18
      %p226 = scmp.lt.s32.totalorder %s18, 4
      %p227 = pnand %p225, %p226
      %p228 = pneg %p227
      // Predicated region
      $region9: #{mymodel_forward.1} parent=5 // pred_check
        _
      $region10: #{mymodel_forward.1} parent=5 // pred_check_branch
        %230 = sbr.rel (%p227) target = $region12
      $region11: #{mymodel_forward.1} parent=5 // pred_region
        %s231 = ssub.s32 %s18, 1
        // Predicated region
        $region13: #{mymodel_forward.1} parent=11 // pred_check
          %p232 = pneg %p65
        $region14: #{mymodel_forward.1} parent=11 // pred_check_branch
          %234 = sbr.rel (%p232) target = $region16
        $region15: #{mymodel_forward.1} parent=11 // pred_region
          _
        $region16: #{mymodel_forward.1} parent=11 // pred_fallthru
          _
        // Predicated region
        $region17: #{mymodel_forward.1} parent=11 // pred_check
          %p235 = pneg %p86
        $region18: #{mymodel_forward.1} parent=11 // pred_check_branch
          %237 = sbr.rel (%p235) target = $region20
        $region19: #{mymodel_forward.1} parent=11 // pred_region
          _
        $region20: #{mymodel_forward.1} parent=11 // pred_fallthru
          _
        // Predicated region
        $region21: #{mymodel_forward.1} parent=11 // pred_check
          %p238 = pneg %p107
        $region22: #{mymodel_forward.1} parent=11 // pred_check_branch
          %240 = sbr.rel (%p238) target = $region24
        $region23: #{mymodel_forward.1} parent=11 // pred_region
          _
        $region24: #{mymodel_forward.1} parent=11 // pred_fallthru
          _
        // Predicated region
        $region25: #{mymodel_forward.1} parent=11 // pred_check
          %p241 = pneg %p128
        $region26: #{mymodel_forward.1} parent=11 // pred_check_branch
          %243 = sbr.rel (%p241) target = $region28
        $region27: #{mymodel_forward.1} parent=11 // pred_region
          _
        $region28: #{mymodel_forward.1} parent=11 // pred_fallthru
          _
        // Predicated region
        $region29: #{mymodel_forward.1} parent=11 // pred_check
          %p244 = pneg %p149
        $region30: #{mymodel_forward.1} parent=11 // pred_check_branch
          %246 = sbr.rel (%p244) target = $region32
        $region31: #{mymodel_forward.1} parent=11 // pred_region
          _
        $region32: #{mymodel_forward.1} parent=11 // pred_fallthru
          _
        // Predicated region
        $region33: #{mymodel_forward.1} parent=11 // pred_check
          %p247 = pneg %p170
        $region34: #{mymodel_forward.1} parent=11 // pred_check_branch
          %249 = sbr.rel (%p247) target = $region36
        $region35: #{mymodel_forward.1} parent=11 // pred_region
          %s251 = ssub.s32 20480, 20480
          %252 = vsyncadd [#allocation3], %s251
          %s253 = sshll.u32 [#allocation2], 4
          %s254 = int_to_ptr.vmem [resolvable:$true] %s253
          %259 = dma.hbm_to_vmem [thread:$0]  %s6, 20480, %s254, [#allocation3], 2560, 2560, 160
        $region36: #{mymodel_forward.1} parent=11 // pred_fallthru
          _
        // Predicated region
        $region37: #{mymodel_forward.1} parent=11 // pred_check
          %p260 = pneg %p191
        $region38: #{mymodel_forward.1} parent=11 // pred_check_branch
          %262 = sbr.rel (%p260) target = $region40
        $region39: #{mymodel_forward.1} parent=11 // pred_region
          _
        $region40: #{mymodel_forward.1} parent=11 // pred_fallthru
          _
      $region12: #{mymodel_forward.1} parent=5 // pred_fallthru
        _
      %p263 = scmp.lt.s32.totalorder %s18, 3
      // Predicated region
      $region41: #{mymodel_forward.1} parent=5 // pred_check
        %p264 = pneg %p263
      $region42: #{mymodel_forward.1} parent=5 // pred_check_branch
        %266 = sbr.rel (%p264) target = $region44
      $region43: #{mymodel_forward.1} parent=5 // pred_region
        // Predicated region
        $region45: #{mymodel_forward.1} parent=43 // pred_check
          %p267 = pneg %p38
        $region46: #{mymodel_forward.1} parent=43 // pred_check_branch
          %269 = sbr.rel (%p267) target = $region48
        $region47: #{mymodel_forward.1} parent=43 // pred_region
          %p270 = scmp.lt.s32.totalorder %s18, 2
          %s271 = scalar_select %p270, %s18, 2
          %s272 = smul.addr %s271, 8
          %s273 = scalar_lea.vmem %s0, %s272
        $region48: #{mymodel_forward.1} parent=43 // pred_fallthru
          _
      $region44: #{mymodel_forward.1} parent=5 // pred_fallthru
        _
      %p274 = scmp.le.s32.totalorder 1, %s18
      %p275 = scmp.lt.s32.totalorder %s18, 4
      %p276 = pnand %p274, %p275
      %p277 = pneg %p276
      // Predicated region
      $region49: #{mymodel_forward.1} parent=5 // pred_check
        _
      $region50: #{mymodel_forward.1} parent=5 // pred_check_branch
        %279 = sbr.rel (%p276) target = $region52
      $region51: #{mymodel_forward.1} parent=5 // pred_region
        %s280 = ssub.s32 %s18, 1
        // Predicated region
        $region53: #{mymodel_forward.1} parent=51 // pred_check
          %p281 = pneg %p170
        $region54: #{mymodel_forward.1} parent=51 // pred_check_branch
          %283 = sbr.rel (%p281) target = $region56
        $region55: #{mymodel_forward.1} parent=51 // pred_region
          %284 = dma.done [#allocation3], 20480
        $region56: #{mymodel_forward.1} parent=51 // pred_fallthru
          _
        %p285 = scmp.lt.s32.totalorder %s23, 2
        %s286 = scalar_select %p285, %s23, 2
        %s287 = smul.addr %s286, 8
        %s288 = scalar_lea.vmem %s0, %s287
        %p289 = pneg %p44
        %p290 = pneg %p41
        %p291 = pneg %p65
        %p292 = pneg %p62
        %p293 = pneg %p86
        %p294 = pneg %p83
        %p295 = pneg %p107
        %p296 = pneg %p104
        %p297 = pneg %p128
        %p298 = pneg %p125
        %p299 = pneg %p149
        %p300 = pneg %p146
        %p301 = pneg %p170
        %p302 = pneg %p167
        %p303 = pneg %p191
        %p304 = pneg %p188
        %p305 = pneg %p217
        %p306 = pneg %p214
        %s307 = sand.u32 %s204, 1
        %s308 = scalar_lea.sflag [#allocation4], %s307
        %s309 = sand.u32 %s204, 1
        %s310 = smul.addr %s309, 160
        %s311 = scalar_lea.vmem [#allocation5], %s310
        %p312 = scmp.lt.s32.totalorder %s23, 2
        %s313 = scalar_select %p312, %s23, 2
        %s314 = smul.addr %s313, 8
        %s315 = scalar_lea.vmem %s0, %s314
        %v316 = vld [vmem:[%s1] sm:$0xff]
        %v317 = vld [vmem:[%s1 + $0x8] sm:$0xff]
        %v318 = vld [vmem:[%s1 + $0x10] sm:$0xff]
        %v319 = vld [vmem:[%s1 + $0x18] sm:$0xff]
        %v320 = vld [vmem:[%s1 + $0x20] sm:$0xff]
        %v321 = vld [vmem:[%s1 + $0x28] sm:$0xff]
        %v322 = vld [vmem:[%s1 + $0x30] sm:$0xff]
        %v323 = vld [vmem:[%s1 + $0x38] sm:$0xff]
        %v324 = vld [vmem:[%s315] sm:$0xff]
        %vm325 = vcmask 523264
        %v327 = vsel %vm325, %v316, 0
        %v330 = vsel %vm325, %v317, 0
        %v333 = vsel %vm325, %v318, 0
        %v336 = vsel %vm325, %v319, 0
        %v339 = vsel %vm325, %v320, 0
        %v342 = vsel %vm325, %v321, 0
        %v345 = vsel %vm325, %v322, 0
        %v348 = vsel %vm325, %v323, 0
        %v351 = vsel %vm325, %v324, 0
        %353 = vmatprep.subr.mxu0 0.0
        %354 = vmatpush1.xpose.msra.mxu0 0.0
        %355 = vmatprep.subr.mxu0 0.0
        %356 = vmatpush1.xpose.msra.mxu0 0.0
        %357 = vmatprep.subr.mxu0 0.0
        %358 = vmatpush1.xpose.msra.mxu0 0.0
        %359 = vmatprep.subr.mxu0 0.0
        %360 = vmatpush1.xpose.msra.mxu0 0.0
        %361 = vmatprep.subr.mxu0 0.0
        %362 = vmatpush1.xpose.msra.mxu0 0.0
        %363 = vmatprep.subr.mxu0 0.0
        %364 = vmatpush1.xpose.msra.mxu0 0.0
        %365 = vmatprep.subr.mxu0 0.0
        %366 = vmatpush1.xpose.msra.mxu0 0.0
        %367 = vmatprep.subr.mxu0 0.0
        %368 = vmatpush1.xpose.msra.mxu0 0.0
        %369 = vmatprep.subr.mxu0 0.0
        %370 = vmatpush1.xpose.msra.mxu0 0.0
        %371 = vmatprep.subr.mxu0 0.0
        %372 = vmatpush1.xpose.msra.mxu0 0.0
        %373 = vmatprep.subr.mxu0 0.0
        %374 = vmatpush1.xpose.msra.mxu0 0.0
        %375 = vmatprep.subr.mxu0 0.0
        %376 = vmatpush1.xpose.msra.mxu0 0.0
        %377 = vmatprep.subr.mxu0 0.0
        %378 = vmatpush1.xpose.msra.mxu0 0.0
        %379 = vmatprep.subr.mxu0 0.0
        %380 = vmatpush1.xpose.msra.mxu0 0.0
        %381 = vmatprep.subr.mxu0 0.0
        %382 = vmatpush1.xpose.msra.mxu0 0.0
        %383 = vmatprep.subr.mxu0 0.0
        %384 = vmatpush1.xpose.msra.mxu0 %v351
        %385 = vmatprep.subr.mxu0 0.0
        %386 = vmatpush2.xpose.msra.mxu0 0.0
        %387 = vmatprep.subr.mxu0 0.0
        %388 = vmatpush2.xpose.msra.mxu0 0.0
        %389 = vmatprep.subr.mxu0 0.0
        %390 = vmatpush2.xpose.msra.mxu0 0.0
        %391 = vmatprep.subr.mxu0 0.0
        %392 = vmatpush2.xpose.msra.mxu0 0.0
        %393 = vmatprep.subr.mxu0 0.0
        %394 = vmatpush2.xpose.msra.mxu0 0.0
        %395 = vmatprep.subr.mxu0 0.0
        %396 = vmatpush2.xpose.msra.mxu0 0.0
        %397 = vmatprep.subr.mxu0 0.0
        %398 = vmatpush2.xpose.msra.mxu0 0.0
        %399 = vmatprep.subr.mxu0 0.0
        %400 = vmatpush2.xpose.msra.mxu0 0.0
        %401 = vmatprep.subr.mxu0 0.0
        %402 = vmatpush2.xpose.msra.mxu0 0.0
        %403 = vmatprep.subr.mxu0 0.0
        %404 = vmatpush2.xpose.msra.mxu0 0.0
        %405 = vmatprep.subr.mxu0 0.0
        %406 = vmatpush2.xpose.msra.mxu0 0.0
        %407 = vmatprep.subr.mxu0 0.0
        %408 = vmatpush2.xpose.msra.mxu0 0.0
        %409 = vmatprep.subr.mxu0 0.0
        %410 = vmatpush2.xpose.msra.mxu0 0.0
        %411 = vmatprep.subr.mxu0 0.0
        %412 = vmatpush2.xpose.msra.mxu0 0.0
        %413 = vmatprep.subr.mxu0 0.0
        %414 = vmatpush2.xpose.msra.mxu0 0.0
        %415 = vmatprep.subr.mxu0 0.0
        %416 = vmatpush2.xpose.msra.mxu0 0.0
        %417 = vmatprep.mubr.f32.mxu0 0.0
        %418 = vmatmul.mubr.f32.gmra.mxu0 %v327
        %v419 = vpop.f32.mrf.mxu0
        %v420 = vadd.f32 0.0, %v419
        %v421 = vpop.f32.mrf.mxu0
        %422 = vmatprep.mubr.f32.mxu0 0.0
        %423 = vmatmul.mubr.f32.gmra.mxu0 %v330
        %v424 = vpop.f32.mrf.mxu0
        %v425 = vadd.f32 0.0, %v424
        %v426 = vpop.f32.mrf.mxu0
        %427 = vmatprep.mubr.f32.mxu0 0.0
        %428 = vmatmul.mubr.f32.gmra.mxu0 %v333
        %v429 = vpop.f32.mrf.mxu0
        %v430 = vadd.f32 0.0, %v429
        %v431 = vpop.f32.mrf.mxu0
        %432 = vmatprep.mubr.f32.mxu0 0.0
        %433 = vmatmul.mubr.f32.gmra.mxu0 %v336
        %v434 = vpop.f32.mrf.mxu0
        %v435 = vadd.f32 0.0, %v434
        %v436 = vpop.f32.mrf.mxu0
        %437 = vmatprep.mubr.f32.mxu0 0.0
        %438 = vmatmul.mubr.f32.gmra.mxu0 %v339
        %v439 = vpop.f32.mrf.mxu0
        %v440 = vadd.f32 0.0, %v439
        %v441 = vpop.f32.mrf.mxu0
        %442 = vmatprep.mubr.f32.mxu0 0.0
        %443 = vmatmul.mubr.f32.gmra.mxu0 %v342
        %v444 = vpop.f32.mrf.mxu0
        %v445 = vadd.f32 0.0, %v444
        %v446 = vpop.f32.mrf.mxu0
        %447 = vmatprep.mubr.f32.mxu0 0.0
        %448 = vmatmul.mubr.f32.gmra.mxu0 %v345
        %v449 = vpop.f32.mrf.mxu0
        %v450 = vadd.f32 0.0, %v449
        %v451 = vpop.f32.mrf.mxu0
        %452 = vmatprep.mubr.f32.mxu0 0.0
        %453 = vmatmul.mubr.f32.gmra.mxu0 %v348
        %v454 = vpop.f32.mrf.mxu0
        %v455 = vadd.f32 0.0, %v454
        %v456 = vpop.f32.mrf.mxu0
        %457 = vdwg.mxu0
        %v458 = vld [vmem:[%s2] sm:$0xff]
        %v459 = vld [vmem:[%s3] sm:$0x1]
        %v461 = vlaneseq
        %v462 = vshrl.u32 %v461, 7
        %v463 = vsub.s32 0, %v462
        %v464 = vrot.slane %v459, %v463
        %vm466 = vcmask 64512
        %v468 = vsel %vm466, %v420, 0
        %v471 = vsel %vm466, %v425, 0
        %v474 = vsel %vm466, %v430, 0
        %v477 = vsel %vm466, %v435, 0
        %v480 = vsel %vm466, %v440, 0
        %v483 = vsel %vm466, %v445, 0
        %v486 = vsel %vm466, %v450, 0
        %v489 = vsel %vm466, %v455, 0
        %491 = vmatprep.subr.mxu0 0.0
        %492 = vmatpush1.msra.mxu0 0.0
        %493 = vmatprep.subr.mxu0 0.0
        %494 = vmatpush1.msra.mxu0 0.0
        %495 = vmatprep.subr.mxu0 0.0
        %496 = vmatpush1.msra.mxu0 0.0
        %497 = vmatprep.subr.mxu0 0.0
        %498 = vmatpush1.msra.mxu0 0.0
        %499 = vmatprep.subr.mxu0 0.0
        %500 = vmatpush1.msra.mxu0 0.0
        %501 = vmatprep.subr.mxu0 0.0
        %502 = vmatpush1.msra.mxu0 0.0
        %503 = vmatprep.subr.mxu0 0.0
        %504 = vmatpush1.msra.mxu0 0.0
        %505 = vmatprep.subr.mxu0 0.0
        %506 = vmatpush1.msra.mxu0 0.0
        %507 = vmatprep.subr.mxu0 0.0
        %508 = vmatpush1.msra.mxu0 0.0
        %509 = vmatprep.subr.mxu0 0.0
        %510 = vmatpush1.msra.mxu0 0.0
        %511 = vmatprep.subr.mxu0 0.0
        %512 = vmatpush1.msra.mxu0 0.0
        %513 = vmatprep.subr.mxu0 0.0
        %514 = vmatpush1.msra.mxu0 0.0
        %515 = vmatprep.subr.mxu0 0.0
        %516 = vmatpush1.msra.mxu0 0.0
        %517 = vmatprep.subr.mxu0 0.0
        %518 = vmatpush1.msra.mxu0 0.0
        %519 = vmatprep.subr.mxu0 0.0
        %520 = vmatpush1.msra.mxu0 0.0
        %521 = vmatprep.subr.mxu0 0.0
        %522 = vmatpush1.msra.mxu0 %v458
        %523 = vmatprep.subr.mxu0 0.0
        %524 = vmatpush2.msra.mxu0 0.0
        %525 = vmatprep.subr.mxu0 0.0
        %526 = vmatpush2.msra.mxu0 0.0
        %527 = vmatprep.subr.mxu0 0.0
        %528 = vmatpush2.msra.mxu0 0.0
        %529 = vmatprep.subr.mxu0 0.0
        %530 = vmatpush2.msra.mxu0 0.0
        %531 = vmatprep.subr.mxu0 0.0
        %532 = vmatpush2.msra.mxu0 0.0
        %533 = vmatprep.subr.mxu0 0.0
        %534 = vmatpush2.msra.mxu0 0.0
        %535 = vmatprep.subr.mxu0 0.0
        %536 = vmatpush2.msra.mxu0 0.0
        %537 = vmatprep.subr.mxu0 0.0
        %538 = vmatpush2.msra.mxu0 0.0
        %539 = vmatprep.subr.mxu0 0.0
        %540 = vmatpush2.msra.mxu0 0.0
        %541 = vmatprep.subr.mxu0 0.0
        %542 = vmatpush2.msra.mxu0 0.0
        %543 = vmatprep.subr.mxu0 0.0
        %544 = vmatpush2.msra.mxu0 0.0
        %545 = vmatprep.subr.mxu0 0.0
        %546 = vmatpush2.msra.mxu0 0.0
        %547 = vmatprep.subr.mxu0 0.0
        %548 = vmatpush2.msra.mxu0 0.0
        %549 = vmatprep.subr.mxu0 0.0
        %550 = vmatpush2.msra.mxu0 0.0
        %551 = vmatprep.subr.mxu0 0.0
        %552 = vmatpush2.msra.mxu0 0.0
        %553 = vmatprep.subr.mxu0 0.0
        %554 = vmatpush2.msra.mxu0 0.0
        %555 = vmatprep.mubr.f32.mxu0 0.0
        %556 = vmatmul.mubr.f32.gmra.mxu0 %v468
        %v557 = vpop.f32.mrf.mxu0
        %v558 = vadd.f32 %v464, %v557
        %v559 = vpop.f32.mrf.mxu0
        %560 = vmatprep.mubr.f32.mxu0 0.0
        %561 = vmatmul.mubr.f32.gmra.mxu0 %v471
        %v562 = vpop.f32.mrf.mxu0
        %v563 = vadd.f32 %v464, %v562
        %v564 = vpop.f32.mrf.mxu0
        %565 = vmatprep.mubr.f32.mxu0 0.0
        %566 = vmatmul.mubr.f32.gmra.mxu0 %v474
        %v567 = vpop.f32.mrf.mxu0
        %v568 = vadd.f32 %v464, %v567
        %v569 = vpop.f32.mrf.mxu0
        %570 = vmatprep.mubr.f32.mxu0 0.0
        %571 = vmatmul.mubr.f32.gmra.mxu0 %v477
        %v572 = vpop.f32.mrf.mxu0
        %v573 = vadd.f32 %v464, %v572
        %v574 = vpop.f32.mrf.mxu0
        %575 = vmatprep.mubr.f32.mxu0 0.0
        %576 = vmatmul.mubr.f32.gmra.mxu0 %v480
        %v577 = vpop.f32.mrf.mxu0
        %v578 = vadd.f32 %v464, %v577
        %v579 = vpop.f32.mrf.mxu0
        %580 = vmatprep.mubr.f32.mxu0 0.0
        %581 = vmatmul.mubr.f32.gmra.mxu0 %v483
        %v582 = vpop.f32.mrf.mxu0
        %v583 = vadd.f32 %v464, %v582
        %v584 = vpop.f32.mrf.mxu0
        %585 = vmatprep.mubr.f32.mxu0 0.0
        %586 = vmatmul.mubr.f32.gmra.mxu0 %v486
        %v587 = vpop.f32.mrf.mxu0
        %v588 = vadd.f32 %v464, %v587
        %v589 = vpop.f32.mrf.mxu0
        %590 = vmatprep.mubr.f32.mxu0 0.0
        %591 = vmatmul.mubr.f32.gmra.mxu0 %v489
        %v592 = vpop.f32.mrf.mxu0
        %v593 = vadd.f32 %v464, %v592
        %v594 = vpop.f32.mrf.mxu0
        %595 = vdwg.mxu0
        %v596 = vtanh.pop %v558
        %v597 = vtanh.pop %v563
        %v598 = vtanh.pop %v568
        %v599 = vtanh.pop %v573
        %v600 = vtanh.pop %v578
        %v601 = vtanh.pop %v583
        %v602 = vtanh.pop %v588
        %v603 = vtanh.pop %v593
        %604 = vmatprep.subr.mxu0 0.0
        %605 = vmatpush1.msra.mxu0 0.0
        %606 = vmatprep.subr.mxu0 0.0
        %607 = vmatpush1.msra.mxu0 0.0
        %608 = vmatprep.subr.mxu0 0.0
        %609 = vmatpush1.msra.mxu0 0.0
        %610 = vmatprep.subr.mxu0 0.0
        %611 = vmatpush1.msra.mxu0 0.0
        %612 = vmatprep.subr.mxu0 0.0
        %613 = vmatpush1.msra.mxu0 0.0
        %614 = vmatprep.subr.mxu0 0.0
        %615 = vmatpush1.msra.mxu0 0.0
        %616 = vmatprep.subr.mxu0 0.0
        %617 = vmatpush1.msra.mxu0 0.0
        %618 = vmatprep.subr.mxu0 0.0
        %619 = vmatpush1.msra.mxu0 0.0
        %620 = vmatprep.subr.mxu0 0.0
        %621 = vmatpush1.msra.mxu0 %v603
        %622 = vmatprep.subr.mxu0 0.0
        %623 = vmatpush1.msra.mxu0 %v602
        %624 = vmatprep.subr.mxu0 0.0
        %625 = vmatpush1.msra.mxu0 %v601
        %626 = vmatprep.subr.mxu0 0.0
        %627 = vmatpush1.msra.mxu0 %v600
        %628 = vmatprep.subr.mxu0 0.0
        %629 = vmatpush1.msra.mxu0 %v599
        %630 = vmatprep.subr.mxu0 0.0
        %631 = vmatpush1.msra.mxu0 %v598
        %632 = vmatprep.subr.mxu0 0.0
        %633 = vmatpush1.msra.mxu0 %v597
        %634 = vmatprep.subr.mxu0 0.0
        %635 = vmatpush1.msra.mxu0 %v596
        %636 = vmatprep.subr.mxu0 0.0
        %637 = vmatpush2.msra.mxu0 0.0
        %638 = vmatprep.subr.mxu0 0.0
        %639 = vmatpush2.msra.mxu0 0.0
        %640 = vmatprep.subr.mxu0 0.0
        %641 = vmatpush2.msra.mxu0 0.0
        %642 = vmatprep.subr.mxu0 0.0
        %643 = vmatpush2.msra.mxu0 0.0
        %644 = vmatprep.subr.mxu0 0.0
        %645 = vmatpush2.msra.mxu0 0.0
        %646 = vmatprep.subr.mxu0 0.0
        %647 = vmatpush2.msra.mxu0 0.0
        %648 = vmatprep.subr.mxu0 0.0
        %649 = vmatpush2.msra.mxu0 0.0
        %650 = vmatprep.subr.mxu0 0.0
        %651 = vmatpush2.msra.mxu0 0.0
        %652 = vmatprep.subr.mxu0 0.0
        %653 = vmatpush2.msra.mxu0 0.0
        %654 = vmatprep.subr.mxu0 0.0
        %655 = vmatpush2.msra.mxu0 0.0
        %656 = vmatprep.subr.mxu0 0.0
        %657 = vmatpush2.msra.mxu0 0.0
        %658 = vmatprep.subr.mxu0 0.0
        %659 = vmatpush2.msra.mxu0 0.0
        %660 = vmatprep.subr.mxu0 0.0
        %661 = vmatpush2.msra.mxu0 0.0
        %662 = vmatprep.subr.mxu0 0.0
        %663 = vmatpush2.msra.mxu0 0.0
        %664 = vmatprep.subr.mxu0 0.0
        %665 = vmatpush2.msra.mxu0 0.0
        %666 = vmatprep.subr.mxu0 0.0
        %667 = vmatpush2.msra.mxu0 0.0
        %668 = vmatprep.mubr.f32.mxu0 0.0
        %669 = vmatmul.mubr.f32.gmra.mxu0 %v327
        %v670 = vpop.f32.mrf.mxu0
        %v671 = vadd.f32 0.0, %v670
        %v672 = vpop.f32.mrf.mxu0
        %673 = vmatprep.mubr.f32.mxu0 0.0
        %674 = vmatmul.mubr.f32.gmra.mxu0 %v330
        %v675 = vpop.f32.mrf.mxu0
        %v676 = vadd.f32 0.0, %v675
        %v677 = vpop.f32.mrf.mxu0
        %678 = vmatprep.mubr.f32.mxu0 0.0
        %679 = vmatmul.mubr.f32.gmra.mxu0 %v333
        %v680 = vpop.f32.mrf.mxu0
        %v681 = vadd.f32 0.0, %v680
        %v682 = vpop.f32.mrf.mxu0
        %683 = vmatprep.mubr.f32.mxu0 0.0
        %684 = vmatmul.mubr.f32.gmra.mxu0 %v336
        %v685 = vpop.f32.mrf.mxu0
        %v686 = vadd.f32 0.0, %v685
        %v687 = vpop.f32.mrf.mxu0
        %688 = vmatprep.mubr.f32.mxu0 0.0
        %689 = vmatmul.mubr.f32.gmra.mxu0 %v339
        %v690 = vpop.f32.mrf.mxu0
        %v691 = vadd.f32 0.0, %v690
        %v692 = vpop.f32.mrf.mxu0
        %693 = vmatprep.mubr.f32.mxu0 0.0
        %694 = vmatmul.mubr.f32.gmra.mxu0 %v342
        %v695 = vpop.f32.mrf.mxu0
        %v696 = vadd.f32 0.0, %v695
        %v697 = vpop.f32.mrf.mxu0
        %698 = vmatprep.mubr.f32.mxu0 0.0
        %699 = vmatmul.mubr.f32.gmra.mxu0 %v345
        %v700 = vpop.f32.mrf.mxu0
        %v701 = vadd.f32 0.0, %v700
        %v702 = vpop.f32.mrf.mxu0
        %703 = vmatprep.mubr.f32.mxu0 0.0
        %704 = vmatmul.mubr.f32.gmra.mxu0 %v348
        %v705 = vpop.f32.mrf.mxu0
        %v706 = vadd.f32 0.0, %v705
        %v707 = vpop.f32.mrf.mxu0
        %708 = vdwg.mxu0
        %v709 = vld [vmem:[%s4] sm:$0xff]
        %v710 = vld [vmem:[%s4 + $0x8] sm:$0xff]
        %v711 = vld [vmem:[%s4 + $0x10] sm:$0xff]
        %v712 = vld [vmem:[%s4 + $0x18] sm:$0xff]
        %v713 = vld [vmem:[%s4 + $0x20] sm:$0xff]
        %v714 = vld [vmem:[%s4 + $0x28] sm:$0xff]
        %v715 = vld [vmem:[%s4 + $0x30] sm:$0xff]
        %v716 = vld [vmem:[%s4 + $0x38] sm:$0xff]
        %v717 = vld [vmem:[%s5] sm:$0x1]
        %v719 = vlaneseq
        %v720 = vshrl.u32 %v719, 7
        %v721 = vsub.s32 0, %v720
        %v722 = vrot.slane %v717, %v721
        %v725 = vsel %vm325, %v671, 0
        %v728 = vsel %vm325, %v676, 0
        %v731 = vsel %vm325, %v681, 0
        %v734 = vsel %vm325, %v686, 0
        %v737 = vsel %vm325, %v691, 0
        %v740 = vsel %vm325, %v696, 0
        %v743 = vsel %vm325, %v701, 0
        %v746 = vsel %vm325, %v706, 0
        %748 = vmatprep.subr.mxu0 0.0
        %749 = vmatpush1.msra.mxu0 0.0
        %750 = vmatprep.subr.mxu0 0.0
        %751 = vmatpush1.msra.mxu0 0.0
        %752 = vmatprep.subr.mxu0 0.0
        %753 = vmatpush1.msra.mxu0 0.0
        %754 = vmatprep.subr.mxu0 0.0
        %755 = vmatpush1.msra.mxu0 0.0
        %756 = vmatprep.subr.mxu0 0.0
        %757 = vmatpush1.msra.mxu0 0.0
        %758 = vmatprep.subr.mxu0 0.0
        %759 = vmatpush1.msra.mxu0 0.0
        %760 = vmatprep.subr.mxu0 0.0
        %761 = vmatpush1.msra.mxu0 0.0
        %762 = vmatprep.subr.mxu0 0.0
        %763 = vmatpush1.msra.mxu0 0.0
        %764 = vmatprep.subr.mxu0 0.0
        %765 = vmatpush1.msra.mxu0 %v716
        %766 = vmatprep.subr.mxu0 0.0
        %767 = vmatpush1.msra.mxu0 %v715
        %768 = vmatprep.subr.mxu0 0.0
        %769 = vmatpush1.msra.mxu0 %v714
        %770 = vmatprep.subr.mxu0 0.0
        %771 = vmatpush1.msra.mxu0 %v713
        %772 = vmatprep.subr.mxu0 0.0
        %773 = vmatpush1.msra.mxu0 %v712
        %774 = vmatprep.subr.mxu0 0.0
        %775 = vmatpush1.msra.mxu0 %v711
        %776 = vmatprep.subr.mxu0 0.0
        %777 = vmatpush1.msra.mxu0 %v710
        %778 = vmatprep.subr.mxu0 0.0
        %779 = vmatpush1.msra.mxu0 %v709
        %780 = vmatprep.subr.mxu0 0.0
        %781 = vmatpush2.msra.mxu0 0.0
        %782 = vmatprep.subr.mxu0 0.0
        %783 = vmatpush2.msra.mxu0 0.0
        %784 = vmatprep.subr.mxu0 0.0
        %785 = vmatpush2.msra.mxu0 0.0
        %786 = vmatprep.subr.mxu0 0.0
        %787 = vmatpush2.msra.mxu0 0.0
        %788 = vmatprep.subr.mxu0 0.0
        %789 = vmatpush2.msra.mxu0 0.0
        %790 = vmatprep.subr.mxu0 0.0
        %791 = vmatpush2.msra.mxu0 0.0
        %792 = vmatprep.subr.mxu0 0.0
        %793 = vmatpush2.msra.mxu0 0.0
        %794 = vmatprep.subr.mxu0 0.0
        %795 = vmatpush2.msra.mxu0 0.0
        %796 = vmatprep.subr.mxu0 0.0
        %797 = vmatpush2.msra.mxu0 0.0
        %798 = vmatprep.subr.mxu0 0.0
        %799 = vmatpush2.msra.mxu0 0.0
        %800 = vmatprep.subr.mxu0 0.0
        %801 = vmatpush2.msra.mxu0 0.0
        %802 = vmatprep.subr.mxu0 0.0
        %803 = vmatpush2.msra.mxu0 0.0
        %804 = vmatprep.subr.mxu0 0.0
        %805 = vmatpush2.msra.mxu0 0.0
        %806 = vmatprep.subr.mxu0 0.0
        %807 = vmatpush2.msra.mxu0 0.0
        %808 = vmatprep.subr.mxu0 0.0
        %809 = vmatpush2.msra.mxu0 0.0
        %810 = vmatprep.subr.mxu0 0.0
        %811 = vmatpush2.msra.mxu0 0.0
        %812 = vmatprep.mubr.f32.mxu0 0.0
        %813 = vmatmul.mubr.f32.gmra.mxu0 %v725
        %v814 = vpop.f32.mrf.mxu0
        %v815 = vadd.f32 %v722, %v814
        %v816 = vpop.f32.mrf.mxu0
        %817 = vmatprep.mubr.f32.mxu0 0.0
        %818 = vmatmul.mubr.f32.gmra.mxu0 %v728
        %v819 = vpop.f32.mrf.mxu0
        %v820 = vadd.f32 %v722, %v819
        %v821 = vpop.f32.mrf.mxu0
        %822 = vmatprep.mubr.f32.mxu0 0.0
        %823 = vmatmul.mubr.f32.gmra.mxu0 %v731
        %v824 = vpop.f32.mrf.mxu0
        %v825 = vadd.f32 %v722, %v824
        %v826 = vpop.f32.mrf.mxu0
        %827 = vmatprep.mubr.f32.mxu0 0.0
        %828 = vmatmul.mubr.f32.gmra.mxu0 %v734
        %v829 = vpop.f32.mrf.mxu0
        %v830 = vadd.f32 %v722, %v829
        %v831 = vpop.f32.mrf.mxu0
        %832 = vmatprep.mubr.f32.mxu0 0.0
        %833 = vmatmul.mubr.f32.gmra.mxu0 %v737
        %v834 = vpop.f32.mrf.mxu0
        %v835 = vadd.f32 %v722, %v834
        %v836 = vpop.f32.mrf.mxu0
        %837 = vmatprep.mubr.f32.mxu0 0.0
        %838 = vmatmul.mubr.f32.gmra.mxu0 %v740
        %v839 = vpop.f32.mrf.mxu0
        %v840 = vadd.f32 %v722, %v839
        %v841 = vpop.f32.mrf.mxu0
        %842 = vmatprep.mubr.f32.mxu0 0.0
        %843 = vmatmul.mubr.f32.gmra.mxu0 %v743
        %v844 = vpop.f32.mrf.mxu0
        %v845 = vadd.f32 %v722, %v844
        %v846 = vpop.f32.mrf.mxu0
        %847 = vmatprep.mubr.f32.mxu0 0.0
        %848 = vmatmul.mubr.f32.gmra.mxu0 %v746
        %v849 = vpop.f32.mrf.mxu0
        %v850 = vadd.f32 %v722, %v849
        %v851 = vpop.f32.mrf.mxu0
        %852 = vdwg.mxu0
        %v853 = vtanh.pop %v815
        %v854 = vtanh.pop %v820
        %v855 = vtanh.pop %v825
        %v856 = vtanh.pop %v830
        %v857 = vtanh.pop %v835
        %v858 = vtanh.pop %v840
        %v859 = vtanh.pop %v845
        %v860 = vtanh.pop %v850
        %v861 = vld [vmem:[#allocation2] sm:$0xff]
        %v862 = vld [vmem:[#allocation2 + $0x8] sm:$0xff]
        %v863 = vld [vmem:[#allocation2 + $0x10] sm:$0xff]
        %v864 = vld [vmem:[#allocation2 + $0x18] sm:$0xff]
        %v865 = vld [vmem:[#allocation2 + $0x20] sm:$0xff]
        %v866 = vld [vmem:[#allocation2 + $0x28] sm:$0xff]
        %v867 = vld [vmem:[#allocation2 + $0x30] sm:$0xff]
        %v868 = vld [vmem:[#allocation2 + $0x38] sm:$0xff]
        %v869 = vld [vmem:[#allocation2 + $0x40] sm:$0xff]
        %v870 = vld [vmem:[#allocation2 + $0x48] sm:$0xff]
        %v871 = vld [vmem:[#allocation2 + $0x50] sm:$0xff]
        %v872 = vld [vmem:[#allocation2 + $0x58] sm:$0xff]
        %v873 = vld [vmem:[#allocation2 + $0x60] sm:$0xff]
        %v874 = vld [vmem:[#allocation2 + $0x68] sm:$0xff]
        %v875 = vld [vmem:[#allocation2 + $0x70] sm:$0xff]
        %v876 = vld [vmem:[#allocation2 + $0x78] sm:$0xff]
        %v877 = vld [vmem:[#allocation2 + $0x80] sm:$0xff]
        %v878 = vld [vmem:[#allocation2 + $0x88] sm:$0xff]
        %v879 = vld [vmem:[#allocation2 + $0x90] sm:$0xff]
        %v880 = vld [vmem:[#allocation2 + $0x98] sm:$0xff]
        %v881 = vld [vmem:[#allocation2 + $0xa0] sm:$0xff]
        %v882 = vld [vmem:[#allocation2 + $0xa8] sm:$0xff]
        %v883 = vld [vmem:[#allocation2 + $0xb0] sm:$0xff]
        %v884 = vld [vmem:[#allocation2 + $0xb8] sm:$0xff]
        %v885 = vld [vmem:[#allocation2 + $0xc0] sm:$0xff]
        %v886 = vld [vmem:[#allocation2 + $0xc8] sm:$0xff]
        %v887 = vld [vmem:[#allocation2 + $0xd0] sm:$0xff]
        %v888 = vld [vmem:[#allocation2 + $0xd8] sm:$0xff]
        %v889 = vld [vmem:[#allocation2 + $0xe0] sm:$0xff]
        %v890 = vld [vmem:[#allocation2 + $0xe8] sm:$0xff]
        %v891 = vld [vmem:[#allocation2 + $0xf0] sm:$0xff]
        %v892 = vld [vmem:[#allocation2 + $0xf8] sm:$0xff]
        %v893 = vld [vmem:[#allocation2 + $0x100] sm:$0xff]
        %v894 = vld [vmem:[#allocation2 + $0x108] sm:$0xff]
        %v895 = vld [vmem:[#allocation2 + $0x110] sm:$0xff]
        %v896 = vld [vmem:[#allocation2 + $0x118] sm:$0xff]
        %v897 = vld [vmem:[#allocation2 + $0x120] sm:$0xff]
        %v898 = vld [vmem:[#allocation2 + $0x128] sm:$0xff]
        %v899 = vld [vmem:[#allocation2 + $0x130] sm:$0xff]
        %v900 = vld [vmem:[#allocation2 + $0x138] sm:$0xff]
        %v901 = vld [vmem:[#allocation2 + $0x140] sm:$0xff]
        %v902 = vld [vmem:[#allocation2 + $0x148] sm:$0xff]
        %v903 = vld [vmem:[#allocation2 + $0x150] sm:$0xff]
        %v904 = vld [vmem:[#allocation2 + $0x158] sm:$0xff]
        %v905 = vld [vmem:[#allocation2 + $0x160] sm:$0xff]
        %v906 = vld [vmem:[#allocation2 + $0x168] sm:$0xff]
        %v907 = vld [vmem:[#allocation2 + $0x170] sm:$0xff]
        %v908 = vld [vmem:[#allocation2 + $0x178] sm:$0xff]
        %v909 = vld [vmem:[#allocation2 + $0x180] sm:$0xff]
        %v910 = vld [vmem:[#allocation2 + $0x188] sm:$0xff]
        %v911 = vld [vmem:[#allocation2 + $0x190] sm:$0xff]
        %v912 = vld [vmem:[#allocation2 + $0x198] sm:$0xff]
        %v913 = vld [vmem:[#allocation2 + $0x1a0] sm:$0xff]
        %v914 = vld [vmem:[#allocation2 + $0x1a8] sm:$0xff]
        %v915 = vld [vmem:[#allocation2 + $0x1b0] sm:$0xff]
        %v916 = vld [vmem:[#allocation2 + $0x1b8] sm:$0xff]
        %v917 = vld [vmem:[#allocation2 + $0x1c0] sm:$0xff]
        %v918 = vld [vmem:[#allocation2 + $0x1c8] sm:$0xff]
        %v919 = vld [vmem:[#allocation2 + $0x1d0] sm:$0xff]
        %v920 = vld [vmem:[#allocation2 + $0x1d8] sm:$0xff]
        %v921 = vld [vmem:[#allocation2 + $0x1e0] sm:$0xff]
        %v922 = vld [vmem:[#allocation2 + $0x1e8] sm:$0xff]
        %v923 = vld [vmem:[#allocation2 + $0x1f0] sm:$0xff]
        %v924 = vld [vmem:[#allocation2 + $0x1f8] sm:$0xff]
        %v925 = vld [vmem:[#allocation2 + $0x200] sm:$0xff]
        %v926 = vld [vmem:[#allocation2 + $0x208] sm:$0xff]
        %v927 = vld [vmem:[#allocation2 + $0x210] sm:$0xff]
        %v928 = vld [vmem:[#allocation2 + $0x218] sm:$0xff]
        %v929 = vld [vmem:[#allocation2 + $0x220] sm:$0xff]
        %v930 = vld [vmem:[#allocation2 + $0x228] sm:$0xff]
        %v931 = vld [vmem:[#allocation2 + $0x230] sm:$0xff]
        %v932 = vld [vmem:[#allocation2 + $0x238] sm:$0xff]
        %v933 = vld [vmem:[#allocation2 + $0x240] sm:$0xff]
        %v934 = vld [vmem:[#allocation2 + $0x248] sm:$0xff]
        %v935 = vld [vmem:[#allocation2 + $0x250] sm:$0xff]
        %v936 = vld [vmem:[#allocation2 + $0x258] sm:$0xff]
        %v937 = vld [vmem:[#allocation2 + $0x260] sm:$0xff]
        %v938 = vld [vmem:[#allocation2 + $0x268] sm:$0xff]
        %v939 = vld [vmem:[#allocation2 + $0x270] sm:$0xff]
        %v940 = vld [vmem:[#allocation2 + $0x278] sm:$0xff]
        %v941 = vld [vmem:[#allocation2 + $0x280] sm:$0xff]
        %v942 = vld [vmem:[#allocation2 + $0x288] sm:$0xff]
        %v943 = vld [vmem:[#allocation2 + $0x290] sm:$0xff]
        %v944 = vld [vmem:[#allocation2 + $0x298] sm:$0xff]
        %v945 = vld [vmem:[#allocation2 + $0x2a0] sm:$0xff]
        %v946 = vld [vmem:[#allocation2 + $0x2a8] sm:$0xff]
        %v947 = vld [vmem:[#allocation2 + $0x2b0] sm:$0xff]
        %v948 = vld [vmem:[#allocation2 + $0x2b8] sm:$0xff]
        %v949 = vld [vmem:[#allocation2 + $0x2c0] sm:$0xff]
        %v950 = vld [vmem:[#allocation2 + $0x2c8] sm:$0xff]
        %v951 = vld [vmem:[#allocation2 + $0x2d0] sm:$0xff]
        %v952 = vld [vmem:[#allocation2 + $0x2d8] sm:$0xff]
        %v953 = vld [vmem:[#allocation2 + $0x2e0] sm:$0xff]
        %v954 = vld [vmem:[#allocation2 + $0x2e8] sm:$0xff]
        %v955 = vld [vmem:[#allocation2 + $0x2f0] sm:$0xff]
        %v956 = vld [vmem:[#allocation2 + $0x2f8] sm:$0xff]
        %v957 = vld [vmem:[#allocation2 + $0x300] sm:$0xff]
        %v958 = vld [vmem:[#allocation2 + $0x308] sm:$0xff]
        %v959 = vld [vmem:[#allocation2 + $0x310] sm:$0xff]
        %v960 = vld [vmem:[#allocation2 + $0x318] sm:$0xff]
        %v961 = vld [vmem:[#allocation2 + $0x320] sm:$0xff]
        %v962 = vld [vmem:[#allocation2 + $0x328] sm:$0xff]
        %v963 = vld [vmem:[#allocation2 + $0x330] sm:$0xff]
        %v964 = vld [vmem:[#allocation2 + $0x338] sm:$0xff]
        %v965 = vld [vmem:[#allocation2 + $0x340] sm:$0xff]
        %v966 = vld [vmem:[#allocation2 + $0x348] sm:$0xff]
        %v967 = vld [vmem:[#allocation2 + $0x350] sm:$0xff]
        %v968 = vld [vmem:[#allocation2 + $0x358] sm:$0xff]
        %v969 = vld [vmem:[#allocation2 + $0x360] sm:$0xff]
        %v970 = vld [vmem:[#allocation2 + $0x368] sm:$0xff]
        %v971 = vld [vmem:[#allocation2 + $0x370] sm:$0xff]
        %v972 = vld [vmem:[#allocation2 + $0x378] sm:$0xff]
        %v973 = vld [vmem:[#allocation2 + $0x380] sm:$0xff]
        %v974 = vld [vmem:[#allocation2 + $0x388] sm:$0xff]
        %v975 = vld [vmem:[#allocation2 + $0x390] sm:$0xff]
        %v976 = vld [vmem:[#allocation2 + $0x398] sm:$0xff]
        %v977 = vld [vmem:[#allocation2 + $0x3a0] sm:$0xff]
        %v978 = vld [vmem:[#allocation2 + $0x3a8] sm:$0xff]
        %v979 = vld [vmem:[#allocation2 + $0x3b0] sm:$0xff]
        %v980 = vld [vmem:[#allocation2 + $0x3b8] sm:$0xff]
        %v981 = vld [vmem:[#allocation2 + $0x3c0] sm:$0xff]
        %v982 = vld [vmem:[#allocation2 + $0x3c8] sm:$0xff]
        %v983 = vld [vmem:[#allocation2 + $0x3d0] sm:$0xff]
        %v984 = vld [vmem:[#allocation2 + $0x3d8] sm:$0xff]
        %v985 = vld [vmem:[#allocation2 + $0x3e0] sm:$0xff]
        %v986 = vld [vmem:[#allocation2 + $0x3e8] sm:$0xff]
        %v987 = vld [vmem:[#allocation2 + $0x3f0] sm:$0xff]
        %v988 = vld [vmem:[#allocation2 + $0x3f8] sm:$0xff]
        %v989 = vld [vmem:[#allocation2 + $0x400] sm:$0xff]
        %v990 = vld [vmem:[#allocation2 + $0x408] sm:$0xff]
        %v991 = vld [vmem:[#allocation2 + $0x410] sm:$0xff]
        %v992 = vld [vmem:[#allocation2 + $0x418] sm:$0xff]
        %v993 = vld [vmem:[#allocation2 + $0x420] sm:$0xff]
        %v994 = vld [vmem:[#allocation2 + $0x428] sm:$0xff]
        %v995 = vld [vmem:[#allocation2 + $0x430] sm:$0xff]
        %v996 = vld [vmem:[#allocation2 + $0x438] sm:$0xff]
        %v997 = vld [vmem:[#allocation2 + $0x440] sm:$0xff]
        %v998 = vld [vmem:[#allocation2 + $0x448] sm:$0xff]
        %v999 = vld [vmem:[#allocation2 + $0x450] sm:$0xff]
        %v1000 = vld [vmem:[#allocation2 + $0x458] sm:$0xff]
        %v1001 = vld [vmem:[#allocation2 + $0x460] sm:$0xff]
        %v1002 = vld [vmem:[#allocation2 + $0x468] sm:$0xff]
        %v1003 = vld [vmem:[#allocation2 + $0x470] sm:$0xff]
        %v1004 = vld [vmem:[#allocation2 + $0x478] sm:$0xff]
        %v1005 = vld [vmem:[#allocation2 + $0x480] sm:$0xff]
        %v1006 = vld [vmem:[#allocation2 + $0x488] sm:$0xff]
        %v1007 = vld [vmem:[#allocation2 + $0x490] sm:$0xff]
        %v1008 = vld [vmem:[#allocation2 + $0x498] sm:$0xff]
        %v1009 = vld [vmem:[#allocation2 + $0x4a0] sm:$0xff]
        %v1010 = vld [vmem:[#allocation2 + $0x4a8] sm:$0xff]
        %v1011 = vld [vmem:[#allocation2 + $0x4b0] sm:$0xff]
        %v1012 = vld [vmem:[#allocation2 + $0x4b8] sm:$0xff]
        %v1013 = vld [vmem:[#allocation2 + $0x4c0] sm:$0xff]
        %v1014 = vld [vmem:[#allocation2 + $0x4c8] sm:$0xff]
        %v1015 = vld [vmem:[#allocation2 + $0x4d0] sm:$0xff]
        %v1016 = vld [vmem:[#allocation2 + $0x4d8] sm:$0xff]
        %v1017 = vld [vmem:[#allocation2 + $0x4e0] sm:$0xff]
        %v1018 = vld [vmem:[#allocation2 + $0x4e8] sm:$0xff]
        %v1019 = vld [vmem:[#allocation2 + $0x4f0] sm:$0xff]
        %v1020 = vld [vmem:[#allocation2 + $0x4f8] sm:$0xff]
        %v1021 = vld [vmem:[%s7] sm:$0xff]
        %v1022 = vld [vmem:[%s7 + $0x8] sm:$0xff]
        %v1023 = vld [vmem:[%s7 + $0x10] sm:$0xf]
        %v1027 = vlaneseq
        %v1028 = vshrl.u32 %v1027, 7
        %v1029 = vsub.s32 0, %v1028
        %v1030 = vrot.slane %v1021, %v1029
        %v1031 = vlaneseq
        %v1032 = vshrl.u32 %v1031, 7
        %v1033 = vsub.s32 1, %v1032
        %v1034 = vrot.slane %v1021, %v1033
        %v1035 = vlaneseq
        %v1036 = vshrl.u32 %v1035, 7
        %v1037 = vsub.s32 2, %v1036
        %v1038 = vrot.slane %v1021, %v1037
        %v1039 = vlaneseq
        %v1040 = vshrl.u32 %v1039, 7
        %v1041 = vsub.s32 3, %v1040
        %v1042 = vrot.slane %v1021, %v1041
        %v1043 = vlaneseq
        %v1044 = vshrl.u32 %v1043, 7
        %v1045 = vsub.s32 4, %v1044
        %v1046 = vrot.slane %v1021, %v1045
        %v1047 = vlaneseq
        %v1048 = vshrl.u32 %v1047, 7
        %v1049 = vsub.s32 5, %v1048
        %v1050 = vrot.slane %v1021, %v1049
        %v1051 = vlaneseq
        %v1052 = vshrl.u32 %v1051, 7
        %v1053 = vsub.s32 6, %v1052
        %v1054 = vrot.slane %v1021, %v1053
        %v1055 = vlaneseq
        %v1056 = vshrl.u32 %v1055, 7
        %v1057 = vsub.s32 7, %v1056
        %v1058 = vrot.slane %v1021, %v1057
        %v1059 = vlaneseq
        %v1060 = vshrl.u32 %v1059, 7
        %v1061 = vsub.s32 0, %v1060
        %v1062 = vrot.slane %v1022, %v1061
        %v1063 = vlaneseq
        %v1064 = vshrl.u32 %v1063, 7
        %v1065 = vsub.s32 1, %v1064
        %v1066 = vrot.slane %v1022, %v1065
        %v1067 = vlaneseq
        %v1068 = vshrl.u32 %v1067, 7
        %v1069 = vsub.s32 2, %v1068
        %v1070 = vrot.slane %v1022, %v1069
        %v1071 = vlaneseq
        %v1072 = vshrl.u32 %v1071, 7
        %v1073 = vsub.s32 3, %v1072
        %v1074 = vrot.slane %v1022, %v1073
        %v1075 = vlaneseq
        %v1076 = vshrl.u32 %v1075, 7
        %v1077 = vsub.s32 4, %v1076
        %v1078 = vrot.slane %v1022, %v1077
        %v1079 = vlaneseq
        %v1080 = vshrl.u32 %v1079, 7
        %v1081 = vsub.s32 5, %v1080
        %v1082 = vrot.slane %v1022, %v1081
        %v1083 = vlaneseq
        %v1084 = vshrl.u32 %v1083, 7
        %v1085 = vsub.s32 6, %v1084
        %v1086 = vrot.slane %v1022, %v1085
        %v1087 = vlaneseq
        %v1088 = vshrl.u32 %v1087, 7
        %v1089 = vsub.s32 7, %v1088
        %v1090 = vrot.slane %v1022, %v1089
        %v1091 = vlaneseq
        %v1092 = vshrl.u32 %v1091, 7
        %v1093 = vsub.s32 0, %v1092
        %v1094 = vrot.slane %v1023, %v1093
        %v1095 = vlaneseq
        %v1096 = vshrl.u32 %v1095, 7
        %v1097 = vsub.s32 1, %v1096
        %v1098 = vrot.slane %v1023, %v1097
        %v1099 = vlaneseq
        %v1100 = vshrl.u32 %v1099, 7
        %v1101 = vsub.s32 2, %v1100
        %v1102 = vrot.slane %v1023, %v1101
        %v1103 = vlaneseq
        %v1104 = vshrl.u32 %v1103, 7
        %v1105 = vsub.s32 3, %v1104
        %v1106 = vrot.slane %v1023, %v1105
        %1127 = vxpose.xlu0.b32.start [1/16] %v853, 128
        %1128 = vxpose.xlu0.b32.cont [2/16] %v854, 128
        %1129 = vxpose.xlu0.b32.cont [3/16] %v855, 128
        %1130 = vxpose.xlu0.b32.cont [4/16] %v856, 128
        %1131 = vxpose.xlu0.b32.cont [5/16] %v857, 128
        %1132 = vxpose.xlu0.b32.cont [6/16] %v858, 128
        %1133 = vxpose.xlu0.b32.cont [7/16] %v859, 128
        %1134 = vxpose.xlu0.b32.cont [8/16] %v860, 128
        %1135 = vxpose.xlu0.b32.cont [9/16] 0.0, 128
        %1136 = vxpose.xlu0.b32.cont [10/16] 0.0, 128
        %1137 = vxpose.xlu0.b32.cont [11/16] 0.0, 128
        %1138 = vxpose.xlu0.b32.cont [12/16] 0.0, 128
        %1139 = vxpose.xlu0.b32.cont [13/16] 0.0, 128
        %1140 = vxpose.xlu0.b32.cont [14/16] 0.0, 128
        %1141 = vxpose.xlu0.b32.cont [15/16] 0.0, 128
        %1142 = vxpose.xlu0.b32.end [16/16] 0.0, 128
        %v1143 = vpop.trf.xlu0
        %v1144 = vpop.trf.xlu0
        %v1145 = vpop.trf.xlu0
        %v1146 = vpop.trf.xlu0
        %v1147 = vpop.trf.xlu0
        %v1148 = vpop.trf.xlu0
        %v1149 = vpop.trf.xlu0
        %v1150 = vpop.trf.xlu0
        %v1151 = vpop.trf.xlu0
        %v1152 = vpop.trf.xlu0
        %v1153 = vpop.trf.xlu0
        %v1154 = vpop.trf.xlu0
        %v1155 = vpop.trf.xlu0
        %v1156 = vpop.trf.xlu0
        %v1157 = vpop.trf.xlu0
        %v1158 = vpop.trf.xlu0
        %v1160 = vsel %vm325, %v1143, 0
        %1162 = vmatprep.subr.mxu0 0.0
        %1163 = vmatpush1.msra.mxu0 0.0
        %1164 = vmatprep.subr.mxu0 0.0
        %1165 = vmatpush1.msra.mxu0 0.0
        %1166 = vmatprep.subr.mxu0 0.0
        %1167 = vmatpush1.msra.mxu0 0.0
        %1168 = vmatprep.subr.mxu0 0.0
        %1169 = vmatpush1.msra.mxu0 0.0
        %1170 = vmatprep.subr.mxu0 0.0
        %1171 = vmatpush1.msra.mxu0 0.0
        %1172 = vmatprep.subr.mxu0 0.0
        %1173 = vmatpush1.msra.mxu0 0.0
        %1174 = vmatprep.subr.mxu0 0.0
        %1175 = vmatpush1.msra.mxu0 0.0
        %1176 = vmatprep.subr.mxu0 0.0
        %1177 = vmatpush1.msra.mxu0 0.0
        %1178 = vmatprep.subr.mxu0 %v1002
        %1179 = vmatpush1.msra.mxu0 %v1001
        %1180 = vmatprep.subr.mxu0 %v982
        %1181 = vmatpush1.msra.mxu0 %v981
        %1182 = vmatprep.subr.mxu0 %v962
        %1183 = vmatpush1.msra.mxu0 %v961
        %1184 = vmatprep.subr.mxu0 %v942
        %1185 = vmatpush1.msra.mxu0 %v941
        %1186 = vmatprep.subr.mxu0 %v922
        %1187 = vmatpush1.msra.mxu0 %v921
        %1188 = vmatprep.subr.mxu0 %v902
        %1189 = vmatpush1.msra.mxu0 %v901
        %1190 = vmatprep.subr.mxu0 %v882
        %1191 = vmatpush1.msra.mxu0 %v881
        %1192 = vmatprep.subr.mxu0 %v862
        %1193 = vmatpush1.msra.mxu0 %v861
        %1194 = vmatprep.subr.mxu0 0.0
        %1195 = vmatpush2.msra.mxu0 0.0
        %1196 = vmatprep.subr.mxu0 0.0
        %1197 = vmatpush2.msra.mxu0 0.0
        %1198 = vmatprep.subr.mxu0 0.0
        %1199 = vmatpush2.msra.mxu0 0.0
        %1200 = vmatprep.subr.mxu0 0.0
        %1201 = vmatpush2.msra.mxu0 0.0
        %1202 = vmatprep.subr.mxu0 0.0
        %1203 = vmatpush2.msra.mxu0 0.0
        %1204 = vmatprep.subr.mxu0 0.0
        %1205 = vmatpush2.msra.mxu0 0.0
        %1206 = vmatprep.subr.mxu0 0.0
        %1207 = vmatpush2.msra.mxu0 0.0
        %1208 = vmatprep.subr.mxu0 0.0
        %1209 = vmatpush2.msra.mxu0 0.0
        %1210 = vmatprep.subr.mxu0 0.0
        %1211 = vmatpush2.msra.mxu0 0.0
        %1212 = vmatprep.subr.mxu0 0.0
        %1213 = vmatpush2.msra.mxu0 0.0
        %1214 = vmatprep.subr.mxu0 0.0
        %1215 = vmatpush2.msra.mxu0 0.0
        %1216 = vmatprep.subr.mxu0 0.0
        %1217 = vmatpush2.msra.mxu0 0.0
        %1218 = vmatprep.subr.mxu0 0.0
        %1219 = vmatpush2.msra.mxu0 0.0
        %1220 = vmatprep.subr.mxu0 0.0
        %1221 = vmatpush2.msra.mxu0 0.0
        %1222 = vmatprep.subr.mxu0 0.0
        %1223 = vmatpush2.msra.mxu0 0.0
        %1224 = vmatprep.subr.mxu0 0.0
        %1225 = vmatpush2.msra.mxu0 0.0
        %1226 = vmatprep.mubr.f32.mxu0 0.0
        %1227 = vmatmul.mubr.f32.gmra.mxu0 %v1160
        %v1228 = vpop.f32.mrf.mxu0
        %v1229 = vadd.f32 %v1030, %v1228
        %v1230 = vpop.f32.mrf.mxu0
        %v1231 = vadd.f32 %v1034, %v1230
        %1232 = vdwg.mxu0
        %1233 = vmatprep.subr.mxu0 0.0
        %1234 = vmatpush1.msra.mxu0 0.0
        %1235 = vmatprep.subr.mxu0 0.0
        %1236 = vmatpush1.msra.mxu0 0.0
        %1237 = vmatprep.subr.mxu0 0.0
        %1238 = vmatpush1.msra.mxu0 0.0
        %1239 = vmatprep.subr.mxu0 0.0
        %1240 = vmatpush1.msra.mxu0 0.0
        %1241 = vmatprep.subr.mxu0 0.0
        %1242 = vmatpush1.msra.mxu0 0.0
        %1243 = vmatprep.subr.mxu0 0.0
        %1244 = vmatpush1.msra.mxu0 0.0
        %1245 = vmatprep.subr.mxu0 0.0
        %1246 = vmatpush1.msra.mxu0 0.0
        %1247 = vmatprep.subr.mxu0 0.0
        %1248 = vmatpush1.msra.mxu0 0.0
        %1249 = vmatprep.subr.mxu0 %v1004
        %1250 = vmatpush1.msra.mxu0 %v1003
        %1251 = vmatprep.subr.mxu0 %v984
        %1252 = vmatpush1.msra.mxu0 %v983
        %1253 = vmatprep.subr.mxu0 %v964
        %1254 = vmatpush1.msra.mxu0 %v963
        %1255 = vmatprep.subr.mxu0 %v944
        %1256 = vmatpush1.msra.mxu0 %v943
        %1257 = vmatprep.subr.mxu0 %v924
        %1258 = vmatpush1.msra.mxu0 %v923
        %1259 = vmatprep.subr.mxu0 %v904
        %1260 = vmatpush1.msra.mxu0 %v903
        %1261 = vmatprep.subr.mxu0 %v884
        %1262 = vmatpush1.msra.mxu0 %v883
        %1263 = vmatprep.subr.mxu0 %v864
        %1264 = vmatpush1.msra.mxu0 %v863
        %1265 = vmatprep.subr.mxu0 0.0
        %1266 = vmatpush2.msra.mxu0 0.0
        %1267 = vmatprep.subr.mxu0 0.0
        %1268 = vmatpush2.msra.mxu0 0.0
        %1269 = vmatprep.subr.mxu0 0.0
        %1270 = vmatpush2.msra.mxu0 0.0
        %1271 = vmatprep.subr.mxu0 0.0
        %1272 = vmatpush2.msra.mxu0 0.0
        %1273 = vmatprep.subr.mxu0 0.0
        %1274 = vmatpush2.msra.mxu0 0.0
        %1275 = vmatprep.subr.mxu0 0.0
        %1276 = vmatpush2.msra.mxu0 0.0
        %1277 = vmatprep.subr.mxu0 0.0
        %1278 = vmatpush2.msra.mxu0 0.0
        %1279 = vmatprep.subr.mxu0 0.0
        %1280 = vmatpush2.msra.mxu0 0.0
        %1281 = vmatprep.subr.mxu0 0.0
        %1282 = vmatpush2.msra.mxu0 0.0
        %1283 = vmatprep.subr.mxu0 0.0
        %1284 = vmatpush2.msra.mxu0 0.0
        %1285 = vmatprep.subr.mxu0 0.0
        %1286 = vmatpush2.msra.mxu0 0.0
        %1287 = vmatprep.subr.mxu0 0.0
        %1288 = vmatpush2.msra.mxu0 0.0
        %1289 = vmatprep.subr.mxu0 0.0
        %1290 = vmatpush2.msra.mxu0 0.0
        %1291 = vmatprep.subr.mxu0 0.0
        %1292 = vmatpush2.msra.mxu0 0.0
        %1293 = vmatprep.subr.mxu0 0.0
        %1294 = vmatpush2.msra.mxu0 0.0
        %1295 = vmatprep.subr.mxu0 0.0
        %1296 = vmatpush2.msra.mxu0 0.0
        %1297 = vmatprep.mubr.f32.mxu0 0.0
        %1298 = vmatmul.mubr.f32.gmra.mxu0 %v1160
        %v1299 = vpop.f32.mrf.mxu0
        %v1300 = vadd.f32 %v1038, %v1299
        %v1301 = vpop.f32.mrf.mxu0
        %v1302 = vadd.f32 %v1042, %v1301
        %1303 = vdwg.mxu0
        %1304 = vmatprep.subr.mxu0 0.0
        %1305 = vmatpush1.msra.mxu0 0.0
        %1306 = vmatprep.subr.mxu0 0.0
        %1307 = vmatpush1.msra.mxu0 0.0
        %1308 = vmatprep.subr.mxu0 0.0
        %1309 = vmatpush1.msra.mxu0 0.0
        %1310 = vmatprep.subr.mxu0 0.0
        %1311 = vmatpush1.msra.mxu0 0.0
        %1312 = vmatprep.subr.mxu0 0.0
        %1313 = vmatpush1.msra.mxu0 0.0
        %1314 = vmatprep.subr.mxu0 0.0
        %1315 = vmatpush1.msra.mxu0 0.0
        %1316 = vmatprep.subr.mxu0 0.0
        %1317 = vmatpush1.msra.mxu0 0.0
        %1318 = vmatprep.subr.mxu0 0.0
        %1319 = vmatpush1.msra.mxu0 0.0
        %1320 = vmatprep.subr.mxu0 %v1006
        %1321 = vmatpush1.msra.mxu0 %v1005
        %1322 = vmatprep.subr.mxu0 %v986
        %1323 = vmatpush1.msra.mxu0 %v985
        %1324 = vmatprep.subr.mxu0 %v966
        %1325 = vmatpush1.msra.mxu0 %v965
        %1326 = vmatprep.subr.mxu0 %v946
        %1327 = vmatpush1.msra.mxu0 %v945
        %1328 = vmatprep.subr.mxu0 %v926
        %1329 = vmatpush1.msra.mxu0 %v925
        %1330 = vmatprep.subr.mxu0 %v906
        %1331 = vmatpush1.msra.mxu0 %v905
        %1332 = vmatprep.subr.mxu0 %v886
        %1333 = vmatpush1.msra.mxu0 %v885
        %1334 = vmatprep.subr.mxu0 %v866
        %1335 = vmatpush1.msra.mxu0 %v865
        %1336 = vmatprep.subr.mxu0 0.0
        %1337 = vmatpush2.msra.mxu0 0.0
        %1338 = vmatprep.subr.mxu0 0.0
        %1339 = vmatpush2.msra.mxu0 0.0
        %1340 = vmatprep.subr.mxu0 0.0
        %1341 = vmatpush2.msra.mxu0 0.0
        %1342 = vmatprep.subr.mxu0 0.0
        %1343 = vmatpush2.msra.mxu0 0.0
        %1344 = vmatprep.subr.mxu0 0.0
        %1345 = vmatpush2.msra.mxu0 0.0
        %1346 = vmatprep.subr.mxu0 0.0
        %1347 = vmatpush2.msra.mxu0 0.0
        %1348 = vmatprep.subr.mxu0 0.0
        %1349 = vmatpush2.msra.mxu0 0.0
        %1350 = vmatprep.subr.mxu0 0.0
        %1351 = vmatpush2.msra.mxu0 0.0
        %1352 = vmatprep.subr.mxu0 0.0
        %1353 = vmatpush2.msra.mxu0 0.0
        %1354 = vmatprep.subr.mxu0 0.0
        %1355 = vmatpush2.msra.mxu0 0.0
        %1356 = vmatprep.subr.mxu0 0.0
        %1357 = vmatpush2.msra.mxu0 0.0
        %1358 = vmatprep.subr.mxu0 0.0
        %1359 = vmatpush2.msra.mxu0 0.0
        %1360 = vmatprep.subr.mxu0 0.0
        %1361 = vmatpush2.msra.mxu0 0.0
        %1362 = vmatprep.subr.mxu0 0.0
        %1363 = vmatpush2.msra.mxu0 0.0
        %1364 = vmatprep.subr.mxu0 0.0
        %1365 = vmatpush2.msra.mxu0 0.0
        %1366 = vmatprep.subr.mxu0 0.0
        %1367 = vmatpush2.msra.mxu0 0.0
        %1368 = vmatprep.mubr.f32.mxu0 0.0
        %1369 = vmatmul.mubr.f32.gmra.mxu0 %v1160
        %v1370 = vpop.f32.mrf.mxu0
        %v1371 = vadd.f32 %v1046, %v1370
        %v1372 = vpop.f32.mrf.mxu0
        %v1373 = vadd.f32 %v1050, %v1372
        %1374 = vdwg.mxu0
        %1375 = vmatprep.subr.mxu0 0.0
        %1376 = vmatpush1.msra.mxu0 0.0
        %1377 = vmatprep.subr.mxu0 0.0
        %1378 = vmatpush1.msra.mxu0 0.0
        %1379 = vmatprep.subr.mxu0 0.0
        %1380 = vmatpush1.msra.mxu0 0.0
        %1381 = vmatprep.subr.mxu0 0.0
        %1382 = vmatpush1.msra.mxu0 0.0
        %1383 = vmatprep.subr.mxu0 0.0
        %1384 = vmatpush1.msra.mxu0 0.0
        %1385 = vmatprep.subr.mxu0 0.0
        %1386 = vmatpush1.msra.mxu0 0.0
        %1387 = vmatprep.subr.mxu0 0.0
        %1388 = vmatpush1.msra.mxu0 0.0
        %1389 = vmatprep.subr.mxu0 0.0
        %1390 = vmatpush1.msra.mxu0 0.0
        %1391 = vmatprep.subr.mxu0 %v1008
        %1392 = vmatpush1.msra.mxu0 %v1007
        %1393 = vmatprep.subr.mxu0 %v988
        %1394 = vmatpush1.msra.mxu0 %v987
        %1395 = vmatprep.subr.mxu0 %v968
        %1396 = vmatpush1.msra.mxu0 %v967
        %1397 = vmatprep.subr.mxu0 %v948
        %1398 = vmatpush1.msra.mxu0 %v947
        %1399 = vmatprep.subr.mxu0 %v928
        %1400 = vmatpush1.msra.mxu0 %v927
        %1401 = vmatprep.subr.mxu0 %v908
        %1402 = vmatpush1.msra.mxu0 %v907
        %1403 = vmatprep.subr.mxu0 %v888
        %1404 = vmatpush1.msra.mxu0 %v887
        %1405 = vmatprep.subr.mxu0 %v868
        %1406 = vmatpush1.msra.mxu0 %v867
        %1407 = vmatprep.subr.mxu0 0.0
        %1408 = vmatpush2.msra.mxu0 0.0
        %1409 = vmatprep.subr.mxu0 0.0
        %1410 = vmatpush2.msra.mxu0 0.0
        %1411 = vmatprep.subr.mxu0 0.0
        %1412 = vmatpush2.msra.mxu0 0.0
        %1413 = vmatprep.subr.mxu0 0.0
        %1414 = vmatpush2.msra.mxu0 0.0
        %1415 = vmatprep.subr.mxu0 0.0
        %1416 = vmatpush2.msra.mxu0 0.0
        %1417 = vmatprep.subr.mxu0 0.0
        %1418 = vmatpush2.msra.mxu0 0.0
        %1419 = vmatprep.subr.mxu0 0.0
        %1420 = vmatpush2.msra.mxu0 0.0
        %1421 = vmatprep.subr.mxu0 0.0
        %1422 = vmatpush2.msra.mxu0 0.0
        %1423 = vmatprep.subr.mxu0 0.0
        %1424 = vmatpush2.msra.mxu0 0.0
        %1425 = vmatprep.subr.mxu0 0.0
        %1426 = vmatpush2.msra.mxu0 0.0
        %1427 = vmatprep.subr.mxu0 0.0
        %1428 = vmatpush2.msra.mxu0 0.0
        %1429 = vmatprep.subr.mxu0 0.0
        %1430 = vmatpush2.msra.mxu0 0.0
        %1431 = vmatprep.subr.mxu0 0.0
        %1432 = vmatpush2.msra.mxu0 0.0
        %1433 = vmatprep.subr.mxu0 0.0
        %1434 = vmatpush2.msra.mxu0 0.0
        %1435 = vmatprep.subr.mxu0 0.0
        %1436 = vmatpush2.msra.mxu0 0.0
        %1437 = vmatprep.subr.mxu0 0.0
        %1438 = vmatpush2.msra.mxu0 0.0
        %1439 = vmatprep.mubr.f32.mxu0 0.0
        %1440 = vmatmul.mubr.f32.gmra.mxu0 %v1160
        %v1441 = vpop.f32.mrf.mxu0
        %v1442 = vadd.f32 %v1054, %v1441
        %v1443 = vpop.f32.mrf.mxu0
        %v1444 = vadd.f32 %v1058, %v1443
        %1445 = vdwg.mxu0
        %1446 = vmatprep.subr.mxu0 0.0
        %1447 = vmatpush1.msra.mxu0 0.0
        %1448 = vmatprep.subr.mxu0 0.0
        %1449 = vmatpush1.msra.mxu0 0.0
        %1450 = vmatprep.subr.mxu0 0.0
        %1451 = vmatpush1.msra.mxu0 0.0
        %1452 = vmatprep.subr.mxu0 0.0
        %1453 = vmatpush1.msra.mxu0 0.0
        %1454 = vmatprep.subr.mxu0 0.0
        %1455 = vmatpush1.msra.mxu0 0.0
        %1456 = vmatprep.subr.mxu0 0.0
        %1457 = vmatpush1.msra.mxu0 0.0
        %1458 = vmatprep.subr.mxu0 0.0
        %1459 = vmatpush1.msra.mxu0 0.0
        %1460 = vmatprep.subr.mxu0 0.0
        %1461 = vmatpush1.msra.mxu0 0.0
        %1462 = vmatprep.subr.mxu0 %v1010
        %1463 = vmatpush1.msra.mxu0 %v1009
        %1464 = vmatprep.subr.mxu0 %v990
        %1465 = vmatpush1.msra.mxu0 %v989
        %1466 = vmatprep.subr.mxu0 %v970
        %1467 = vmatpush1.msra.mxu0 %v969
        %1468 = vmatprep.subr.mxu0 %v950
        %1469 = vmatpush1.msra.mxu0 %v949
        %1470 = vmatprep.subr.mxu0 %v930
        %1471 = vmatpush1.msra.mxu0 %v929
        %1472 = vmatprep.subr.mxu0 %v910
        %1473 = vmatpush1.msra.mxu0 %v909
        %1474 = vmatprep.subr.mxu0 %v890
        %1475 = vmatpush1.msra.mxu0 %v889
        %1476 = vmatprep.subr.mxu0 %v870
        %1477 = vmatpush1.msra.mxu0 %v869
        %1478 = vmatprep.subr.mxu0 0.0
        %1479 = vmatpush2.msra.mxu0 0.0
        %1480 = vmatprep.subr.mxu0 0.0
        %1481 = vmatpush2.msra.mxu0 0.0
        %1482 = vmatprep.subr.mxu0 0.0
        %1483 = vmatpush2.msra.mxu0 0.0
        %1484 = vmatprep.subr.mxu0 0.0
        %1485 = vmatpush2.msra.mxu0 0.0
        %1486 = vmatprep.subr.mxu0 0.0
        %1487 = vmatpush2.msra.mxu0 0.0
        %1488 = vmatprep.subr.mxu0 0.0
        %1489 = vmatpush2.msra.mxu0 0.0
        %1490 = vmatprep.subr.mxu0 0.0
        %1491 = vmatpush2.msra.mxu0 0.0
        %1492 = vmatprep.subr.mxu0 0.0
        %1493 = vmatpush2.msra.mxu0 0.0
        %1494 = vmatprep.subr.mxu0 0.0
        %1495 = vmatpush2.msra.mxu0 0.0
        %1496 = vmatprep.subr.mxu0 0.0
        %1497 = vmatpush2.msra.mxu0 0.0
        %1498 = vmatprep.subr.mxu0 0.0
        %1499 = vmatpush2.msra.mxu0 0.0
        %1500 = vmatprep.subr.mxu0 0.0
        %1501 = vmatpush2.msra.mxu0 0.0
        %1502 = vmatprep.subr.mxu0 0.0
        %1503 = vmatpush2.msra.mxu0 0.0
        %1504 = vmatprep.subr.mxu0 0.0
        %1505 = vmatpush2.msra.mxu0 0.0
        %1506 = vmatprep.subr.mxu0 0.0
        %1507 = vmatpush2.msra.mxu0 0.0
        %1508 = vmatprep.subr.mxu0 0.0
        %1509 = vmatpush2.msra.mxu0 0.0
        %1510 = vmatprep.mubr.f32.mxu0 0.0
        %1511 = vmatmul.mubr.f32.gmra.mxu0 %v1160
        %v1512 = vpop.f32.mrf.mxu0
        %v1513 = vadd.f32 %v1062, %v1512
        %v1514 = vpop.f32.mrf.mxu0
        %v1515 = vadd.f32 %v1066, %v1514
        %1516 = vdwg.mxu0
        %1517 = vmatprep.subr.mxu0 0.0
        %1518 = vmatpush1.msra.mxu0 0.0
        %1519 = vmatprep.subr.mxu0 0.0
        %1520 = vmatpush1.msra.mxu0 0.0
        %1521 = vmatprep.subr.mxu0 0.0
        %1522 = vmatpush1.msra.mxu0 0.0
        %1523 = vmatprep.subr.mxu0 0.0
        %1524 = vmatpush1.msra.mxu0 0.0
        %1525 = vmatprep.subr.mxu0 0.0
        %1526 = vmatpush1.msra.mxu0 0.0
        %1527 = vmatprep.subr.mxu0 0.0
        %1528 = vmatpush1.msra.mxu0 0.0
        %1529 = vmatprep.subr.mxu0 0.0
        %1530 = vmatpush1.msra.mxu0 0.0
        %1531 = vmatprep.subr.mxu0 0.0
        %1532 = vmatpush1.msra.mxu0 0.0
        %1533 = vmatprep.subr.mxu0 %v1012
        %1534 = vmatpush1.msra.mxu0 %v1011
        %1535 = vmatprep.subr.mxu0 %v992
        %1536 = vmatpush1.msra.mxu0 %v991
        %1537 = vmatprep.subr.mxu0 %v972
        %1538 = vmatpush1.msra.mxu0 %v971
        %1539 = vmatprep.subr.mxu0 %v952
        %1540 = vmatpush1.msra.mxu0 %v951
        %1541 = vmatprep.subr.mxu0 %v932
        %1542 = vmatpush1.msra.mxu0 %v931
        %1543 = vmatprep.subr.mxu0 %v912
        %1544 = vmatpush1.msra.mxu0 %v911
        %1545 = vmatprep.subr.mxu0 %v892
        %1546 = vmatpush1.msra.mxu0 %v891
        %1547 = vmatprep.subr.mxu0 %v872
        %1548 = vmatpush1.msra.mxu0 %v871
        %1549 = vmatprep.subr.mxu0 0.0
        %1550 = vmatpush2.msra.mxu0 0.0
        %1551 = vmatprep.subr.mxu0 0.0
        %1552 = vmatpush2.msra.mxu0 0.0
        %1553 = vmatprep.subr.mxu0 0.0
        %1554 = vmatpush2.msra.mxu0 0.0
        %1555 = vmatprep.subr.mxu0 0.0
        %1556 = vmatpush2.msra.mxu0 0.0
        %1557 = vmatprep.subr.mxu0 0.0
        %1558 = vmatpush2.msra.mxu0 0.0
        %1559 = vmatprep.subr.mxu0 0.0
        %1560 = vmatpush2.msra.mxu0 0.0
        %1561 = vmatprep.subr.mxu0 0.0
        %1562 = vmatpush2.msra.mxu0 0.0
        %1563 = vmatprep.subr.mxu0 0.0
        %1564 = vmatpush2.msra.mxu0 0.0
        %1565 = vmatprep.subr.mxu0 0.0
        %1566 = vmatpush2.msra.mxu0 0.0
        %1567 = vmatprep.subr.mxu0 0.0
        %1568 = vmatpush2.msra.mxu0 0.0
        %1569 = vmatprep.subr.mxu0 0.0
        %1570 = vmatpush2.msra.mxu0 0.0
        %1571 = vmatprep.subr.mxu0 0.0
        %1572 = vmatpush2.msra.mxu0 0.0
        %1573 = vmatprep.subr.mxu0 0.0
        %1574 = vmatpush2.msra.mxu0 0.0
        %1575 = vmatprep.subr.mxu0 0.0
        %1576 = vmatpush2.msra.mxu0 0.0
        %1577 = vmatprep.subr.mxu0 0.0
        %1578 = vmatpush2.msra.mxu0 0.0
        %1579 = vmatprep.subr.mxu0 0.0
        %1580 = vmatpush2.msra.mxu0 0.0
        %1581 = vmatprep.mubr.f32.mxu0 0.0
        %1582 = vmatmul.mubr.f32.gmra.mxu0 %v1160
        %v1583 = vpop.f32.mrf.mxu0
        %v1584 = vadd.f32 %v1070, %v1583
        %v1585 = vpop.f32.mrf.mxu0
        %v1586 = vadd.f32 %v1074, %v1585
        %1587 = vdwg.mxu0
        %1588 = vmatprep.subr.mxu0 0.0
        %1589 = vmatpush1.msra.mxu0 0.0
        %1590 = vmatprep.subr.mxu0 0.0
        %1591 = vmatpush1.msra.mxu0 0.0
        %1592 = vmatprep.subr.mxu0 0.0
        %1593 = vmatpush1.msra.mxu0 0.0
        %1594 = vmatprep.subr.mxu0 0.0
        %1595 = vmatpush1.msra.mxu0 0.0
        %1596 = vmatprep.subr.mxu0 0.0
        %1597 = vmatpush1.msra.mxu0 0.0
        %1598 = vmatprep.subr.mxu0 0.0
        %1599 = vmatpush1.msra.mxu0 0.0
        %1600 = vmatprep.subr.mxu0 0.0
        %1601 = vmatpush1.msra.mxu0 0.0
        %1602 = vmatprep.subr.mxu0 0.0
        %1603 = vmatpush1.msra.mxu0 0.0
        %1604 = vmatprep.subr.mxu0 %v1014
        %1605 = vmatpush1.msra.mxu0 %v1013
        %1606 = vmatprep.subr.mxu0 %v994
        %1607 = vmatpush1.msra.mxu0 %v993
        %1608 = vmatprep.subr.mxu0 %v974
        %1609 = vmatpush1.msra.mxu0 %v973
        %1610 = vmatprep.subr.mxu0 %v954
        %1611 = vmatpush1.msra.mxu0 %v953
        %1612 = vmatprep.subr.mxu0 %v934
        %1613 = vmatpush1.msra.mxu0 %v933
        %1614 = vmatprep.subr.mxu0 %v914
        %1615 = vmatpush1.msra.mxu0 %v913
        %1616 = vmatprep.subr.mxu0 %v894
        %1617 = vmatpush1.msra.mxu0 %v893
        %1618 = vmatprep.subr.mxu0 %v874
        %1619 = vmatpush1.msra.mxu0 %v873
        %1620 = vmatprep.subr.mxu0 0.0
        %1621 = vmatpush2.msra.mxu0 0.0
        %1622 = vmatprep.subr.mxu0 0.0
        %1623 = vmatpush2.msra.mxu0 0.0
        %1624 = vmatprep.subr.mxu0 0.0
        %1625 = vmatpush2.msra.mxu0 0.0
        %1626 = vmatprep.subr.mxu0 0.0
        %1627 = vmatpush2.msra.mxu0 0.0
        %1628 = vmatprep.subr.mxu0 0.0
        %1629 = vmatpush2.msra.mxu0 0.0
        %1630 = vmatprep.subr.mxu0 0.0
        %1631 = vmatpush2.msra.mxu0 0.0
        %1632 = vmatprep.subr.mxu0 0.0
        %1633 = vmatpush2.msra.mxu0 0.0
        %1634 = vmatprep.subr.mxu0 0.0
        %1635 = vmatpush2.msra.mxu0 0.0
        %1636 = vmatprep.subr.mxu0 0.0
        %1637 = vmatpush2.msra.mxu0 0.0
        %1638 = vmatprep.subr.mxu0 0.0
        %1639 = vmatpush2.msra.mxu0 0.0
        %1640 = vmatprep.subr.mxu0 0.0
        %1641 = vmatpush2.msra.mxu0 0.0
        %1642 = vmatprep.subr.mxu0 0.0
        %1643 = vmatpush2.msra.mxu0 0.0
        %1644 = vmatprep.subr.mxu0 0.0
        %1645 = vmatpush2.msra.mxu0 0.0
        %1646 = vmatprep.subr.mxu0 0.0
        %1647 = vmatpush2.msra.mxu0 0.0
        %1648 = vmatprep.subr.mxu0 0.0
        %1649 = vmatpush2.msra.mxu0 0.0
        %1650 = vmatprep.subr.mxu0 0.0
        %1651 = vmatpush2.msra.mxu0 0.0
        %1652 = vmatprep.mubr.f32.mxu0 0.0
        %1653 = vmatmul.mubr.f32.gmra.mxu0 %v1160
        %v1654 = vpop.f32.mrf.mxu0
        %v1655 = vadd.f32 %v1078, %v1654
        %v1656 = vpop.f32.mrf.mxu0
        %v1657 = vadd.f32 %v1082, %v1656
        %1658 = vdwg.mxu0
        %1659 = vmatprep.subr.mxu0 0.0
        %1660 = vmatpush1.msra.mxu0 0.0
        %1661 = vmatprep.subr.mxu0 0.0
        %1662 = vmatpush1.msra.mxu0 0.0
        %1663 = vmatprep.subr.mxu0 0.0
        %1664 = vmatpush1.msra.mxu0 0.0
        %1665 = vmatprep.subr.mxu0 0.0
        %1666 = vmatpush1.msra.mxu0 0.0
        %1667 = vmatprep.subr.mxu0 0.0
        %1668 = vmatpush1.msra.mxu0 0.0
        %1669 = vmatprep.subr.mxu0 0.0
        %1670 = vmatpush1.msra.mxu0 0.0
        %1671 = vmatprep.subr.mxu0 0.0
        %1672 = vmatpush1.msra.mxu0 0.0
        %1673 = vmatprep.subr.mxu0 0.0
        %1674 = vmatpush1.msra.mxu0 0.0
        %1675 = vmatprep.subr.mxu0 %v1016
        %1676 = vmatpush1.msra.mxu0 %v1015
        %1677 = vmatprep.subr.mxu0 %v996
        %1678 = vmatpush1.msra.mxu0 %v995
        %1679 = vmatprep.subr.mxu0 %v976
        %1680 = vmatpush1.msra.mxu0 %v975
        %1681 = vmatprep.subr.mxu0 %v956
        %1682 = vmatpush1.msra.mxu0 %v955
        %1683 = vmatprep.subr.mxu0 %v936
        %1684 = vmatpush1.msra.mxu0 %v935
        %1685 = vmatprep.subr.mxu0 %v916
        %1686 = vmatpush1.msra.mxu0 %v915
        %1687 = vmatprep.subr.mxu0 %v896
        %1688 = vmatpush1.msra.mxu0 %v895
        %1689 = vmatprep.subr.mxu0 %v876
        %1690 = vmatpush1.msra.mxu0 %v875
        %1691 = vmatprep.subr.mxu0 0.0
        %1692 = vmatpush2.msra.mxu0 0.0
        %1693 = vmatprep.subr.mxu0 0.0
        %1694 = vmatpush2.msra.mxu0 0.0
        %1695 = vmatprep.subr.mxu0 0.0
        %1696 = vmatpush2.msra.mxu0 0.0
        %1697 = vmatprep.subr.mxu0 0.0
        %1698 = vmatpush2.msra.mxu0 0.0
        %1699 = vmatprep.subr.mxu0 0.0
        %1700 = vmatpush2.msra.mxu0 0.0
        %1701 = vmatprep.subr.mxu0 0.0
        %1702 = vmatpush2.msra.mxu0 0.0
        %1703 = vmatprep.subr.mxu0 0.0
        %1704 = vmatpush2.msra.mxu0 0.0
        %1705 = vmatprep.subr.mxu0 0.0
        %1706 = vmatpush2.msra.mxu0 0.0
        %1707 = vmatprep.subr.mxu0 0.0
        %1708 = vmatpush2.msra.mxu0 0.0
        %1709 = vmatprep.subr.mxu0 0.0
        %1710 = vmatpush2.msra.mxu0 0.0
        %1711 = vmatprep.subr.mxu0 0.0
        %1712 = vmatpush2.msra.mxu0 0.0
        %1713 = vmatprep.subr.mxu0 0.0
        %1714 = vmatpush2.msra.mxu0 0.0
        %1715 = vmatprep.subr.mxu0 0.0
        %1716 = vmatpush2.msra.mxu0 0.0
        %1717 = vmatprep.subr.mxu0 0.0
        %1718 = vmatpush2.msra.mxu0 0.0
        %1719 = vmatprep.subr.mxu0 0.0
        %1720 = vmatpush2.msra.mxu0 0.0
        %1721 = vmatprep.subr.mxu0 0.0
        %1722 = vmatpush2.msra.mxu0 0.0
        %1723 = vmatprep.mubr.f32.mxu0 0.0
        %1724 = vmatmul.mubr.f32.gmra.mxu0 %v1160
        %v1725 = vpop.f32.mrf.mxu0
        %v1726 = vadd.f32 %v1086, %v1725
        %v1727 = vpop.f32.mrf.mxu0
        %v1728 = vadd.f32 %v1090, %v1727
        %1729 = vdwg.mxu0
        %1730 = vmatprep.subr.mxu0 0.0
        %1731 = vmatpush1.msra.mxu0 0.0
        %1732 = vmatprep.subr.mxu0 0.0
        %1733 = vmatpush1.msra.mxu0 0.0
        %1734 = vmatprep.subr.mxu0 0.0
        %1735 = vmatpush1.msra.mxu0 0.0
        %1736 = vmatprep.subr.mxu0 0.0
        %1737 = vmatpush1.msra.mxu0 0.0
        %1738 = vmatprep.subr.mxu0 0.0
        %1739 = vmatpush1.msra.mxu0 0.0
        %1740 = vmatprep.subr.mxu0 0.0
        %1741 = vmatpush1.msra.mxu0 0.0
        %1742 = vmatprep.subr.mxu0 0.0
        %1743 = vmatpush1.msra.mxu0 0.0
        %1744 = vmatprep.subr.mxu0 0.0
        %1745 = vmatpush1.msra.mxu0 0.0
        %1746 = vmatprep.subr.mxu0 %v1018
        %1747 = vmatpush1.msra.mxu0 %v1017
        %1748 = vmatprep.subr.mxu0 %v998
        %1749 = vmatpush1.msra.mxu0 %v997
        %1750 = vmatprep.subr.mxu0 %v978
        %1751 = vmatpush1.msra.mxu0 %v977
        %1752 = vmatprep.subr.mxu0 %v958
        %1753 = vmatpush1.msra.mxu0 %v957
        %1754 = vmatprep.subr.mxu0 %v938
        %1755 = vmatpush1.msra.mxu0 %v937
        %1756 = vmatprep.subr.mxu0 %v918
        %1757 = vmatpush1.msra.mxu0 %v917
        %1758 = vmatprep.subr.mxu0 %v898
        %1759 = vmatpush1.msra.mxu0 %v897
        %1760 = vmatprep.subr.mxu0 %v878
        %1761 = vmatpush1.msra.mxu0 %v877
        %1762 = vmatprep.subr.mxu0 0.0
        %1763 = vmatpush2.msra.mxu0 0.0
        %1764 = vmatprep.subr.mxu0 0.0
        %1765 = vmatpush2.msra.mxu0 0.0
        %1766 = vmatprep.subr.mxu0 0.0
        %1767 = vmatpush2.msra.mxu0 0.0
        %1768 = vmatprep.subr.mxu0 0.0
        %1769 = vmatpush2.msra.mxu0 0.0
        %1770 = vmatprep.subr.mxu0 0.0
        %1771 = vmatpush2.msra.mxu0 0.0
        %1772 = vmatprep.subr.mxu0 0.0
        %1773 = vmatpush2.msra.mxu0 0.0
        %1774 = vmatprep.subr.mxu0 0.0
        %1775 = vmatpush2.msra.mxu0 0.0
        %1776 = vmatprep.subr.mxu0 0.0
        %1777 = vmatpush2.msra.mxu0 0.0
        %1778 = vmatprep.subr.mxu0 0.0
        %1779 = vmatpush2.msra.mxu0 0.0
        %1780 = vmatprep.subr.mxu0 0.0
        %1781 = vmatpush2.msra.mxu0 0.0
        %1782 = vmatprep.subr.mxu0 0.0
        %1783 = vmatpush2.msra.mxu0 0.0
        %1784 = vmatprep.subr.mxu0 0.0
        %1785 = vmatpush2.msra.mxu0 0.0
        %1786 = vmatprep.subr.mxu0 0.0
        %1787 = vmatpush2.msra.mxu0 0.0
        %1788 = vmatprep.subr.mxu0 0.0
        %1789 = vmatpush2.msra.mxu0 0.0
        %1790 = vmatprep.subr.mxu0 0.0
        %1791 = vmatpush2.msra.mxu0 0.0
        %1792 = vmatprep.subr.mxu0 0.0
        %1793 = vmatpush2.msra.mxu0 0.0
        %1794 = vmatprep.mubr.f32.mxu0 0.0
        %1795 = vmatmul.mubr.f32.gmra.mxu0 %v1160
        %v1796 = vpop.f32.mrf.mxu0
        %v1797 = vadd.f32 %v1094, %v1796
        %v1798 = vpop.f32.mrf.mxu0
        %v1799 = vadd.f32 %v1098, %v1798
        %1800 = vdwg.mxu0
        %1801 = vmatprep.subr.mxu0 0.0
        %1802 = vmatpush1.msra.mxu0 0.0
        %1803 = vmatprep.subr.mxu0 0.0
        %1804 = vmatpush1.msra.mxu0 0.0
        %1805 = vmatprep.subr.mxu0 0.0
        %1806 = vmatpush1.msra.mxu0 0.0
        %1807 = vmatprep.subr.mxu0 0.0
        %1808 = vmatpush1.msra.mxu0 0.0
        %1809 = vmatprep.subr.mxu0 0.0
        %1810 = vmatpush1.msra.mxu0 0.0
        %1811 = vmatprep.subr.mxu0 0.0
        %1812 = vmatpush1.msra.mxu0 0.0
        %1813 = vmatprep.subr.mxu0 0.0
        %1814 = vmatpush1.msra.mxu0 0.0
        %1815 = vmatprep.subr.mxu0 0.0
        %1816 = vmatpush1.msra.mxu0 0.0
        %1817 = vmatprep.subr.mxu0 %v1020
        %1818 = vmatpush1.msra.mxu0 %v1019
        %1819 = vmatprep.subr.mxu0 %v1000
        %1820 = vmatpush1.msra.mxu0 %v999
        %1821 = vmatprep.subr.mxu0 %v980
        %1822 = vmatpush1.msra.mxu0 %v979
        %1823 = vmatprep.subr.mxu0 %v960
        %1824 = vmatpush1.msra.mxu0 %v959
        %1825 = vmatprep.subr.mxu0 %v940
        %1826 = vmatpush1.msra.mxu0 %v939
        %1827 = vmatprep.subr.mxu0 %v920
        %1828 = vmatpush1.msra.mxu0 %v919
        %1829 = vmatprep.subr.mxu0 %v900
        %1830 = vmatpush1.msra.mxu0 %v899
        %1831 = vmatprep.subr.mxu0 %v880
        %1832 = vmatpush1.msra.mxu0 %v879
        %1833 = vmatprep.subr.mxu0 0.0
        %1834 = vmatpush2.msra.mxu0 0.0
        %1835 = vmatprep.subr.mxu0 0.0
        %1836 = vmatpush2.msra.mxu0 0.0
        %1837 = vmatprep.subr.mxu0 0.0
        %1838 = vmatpush2.msra.mxu0 0.0
        %1839 = vmatprep.subr.mxu0 0.0
        %1840 = vmatpush2.msra.mxu0 0.0
        %1841 = vmatprep.subr.mxu0 0.0
        %1842 = vmatpush2.msra.mxu0 0.0
        %1843 = vmatprep.subr.mxu0 0.0
        %1844 = vmatpush2.msra.mxu0 0.0
        %1845 = vmatprep.subr.mxu0 0.0
        %1846 = vmatpush2.msra.mxu0 0.0
        %1847 = vmatprep.subr.mxu0 0.0
        %1848 = vmatpush2.msra.mxu0 0.0
        %1849 = vmatprep.subr.mxu0 0.0
        %1850 = vmatpush2.msra.mxu0 0.0
        %1851 = vmatprep.subr.mxu0 0.0
        %1852 = vmatpush2.msra.mxu0 0.0
        %1853 = vmatprep.subr.mxu0 0.0
        %1854 = vmatpush2.msra.mxu0 0.0
        %1855 = vmatprep.subr.mxu0 0.0
        %1856 = vmatpush2.msra.mxu0 0.0
        %1857 = vmatprep.subr.mxu0 0.0
        %1858 = vmatpush2.msra.mxu0 0.0
        %1859 = vmatprep.subr.mxu0 0.0
        %1860 = vmatpush2.msra.mxu0 0.0
        %1861 = vmatprep.subr.mxu0 0.0
        %1862 = vmatpush2.msra.mxu0 0.0
        %1863 = vmatprep.subr.mxu0 0.0
        %1864 = vmatpush2.msra.mxu0 0.0
        %1865 = vmatprep.mubr.f32.mxu0 0.0
        %1866 = vmatmul.mubr.f32.gmra.mxu0 %v1160
        %v1867 = vpop.f32.mrf.mxu0
        %v1868 = vadd.f32 %v1102, %v1867
        %v1869 = vpop.f32.mrf.mxu0
        %v1870 = vadd.f32 %v1106, %v1869
        %1871 = vdwg.mxu0
        %1872 = vst [vmem:[%s311] sm:$0xff] %v1229
        %1873 = vst [vmem:[%s311 + $0x8] sm:$0xff] %v1231
        %1874 = vst [vmem:[%s311 + $0x10] sm:$0xff] %v1300
        %1875 = vst [vmem:[%s311 + $0x18] sm:$0xff] %v1302
        %1876 = vst [vmem:[%s311 + $0x20] sm:$0xff] %v1371
        %1877 = vst [vmem:[%s311 + $0x28] sm:$0xff] %v1373
        %1878 = vst [vmem:[%s311 + $0x30] sm:$0xff] %v1442
        %1879 = vst [vmem:[%s311 + $0x38] sm:$0xff] %v1444
        %1880 = vst [vmem:[%s311 + $0x40] sm:$0xff] %v1513
        %1881 = vst [vmem:[%s311 + $0x48] sm:$0xff] %v1515
        %1882 = vst [vmem:[%s311 + $0x50] sm:$0xff] %v1584
        %1883 = vst [vmem:[%s311 + $0x58] sm:$0xff] %v1586
        %1884 = vst [vmem:[%s311 + $0x60] sm:$0xff] %v1655
        %1885 = vst [vmem:[%s311 + $0x68] sm:$0xff] %v1657
        %1886 = vst [vmem:[%s311 + $0x70] sm:$0xff] %v1726
        %1887 = vst [vmem:[%s311 + $0x78] sm:$0xff] %v1728
        %1888 = vst [vmem:[%s311 + $0x80] sm:$0xff] %v1797
        %1889 = vst [vmem:[%s311 + $0x88] sm:$0xff] %v1799
        %1890 = vst [vmem:[%s311 + $0x90] sm:$0xff] %v1868
        %1891 = vst [vmem:[%s311 + $0x98] sm:$0xff] %v1870
        %s1892 = sand.u32 %s204, 1
        %s1893 = scalar_lea.sflag [#allocation4], %s1892
        %s1894 = sand.u32 %s204, 1
        %s1895 = smul.addr %s1894, 160
        %s1896 = scalar_lea.vmem [#allocation5], %s1895
        // Predicated region
        $region57: #{mymodel_forward.1} parent=51 // pred_check
          %p1897 = pneg %p214
        $region58: #{mymodel_forward.1} parent=51 // pred_check_branch
          %1899 = sbr.rel (%p1897) target = $region60
        $region59: #{mymodel_forward.1} parent=51 // pred_region
          %s1901 = ssub.s32 2560, 2560
          %1902 = vsyncadd %s1893, %s1901
          %s1903 = smul.addr %s23, 20
          %s1904 = smul.addr %s1903, 128
          %s1905 = scalar_lea.hbm %s8, %s1904
          %s1907 = sshll.u32 %s1896, 4
          %s1908 = int_to_ptr.vmem [resolvable:$true] %s1907
          %1910 = dma.vmem_to_hbm [thread:$0]  %s1908, 2560, %s1905, %s1893
        $region60: #{mymodel_forward.1} parent=51 // pred_fallthru
          _
      $region52: #{mymodel_forward.1} parent=5 // pred_fallthru
        _
      %p1911 = scmp.le.s32.totalorder 2, %s18
      // Predicated region
      $region61: #{mymodel_forward.1} parent=5 // pred_check
        %p1912 = pneg %p1911
      $region62: #{mymodel_forward.1} parent=5 // pred_check_branch
        %1914 = sbr.rel (%p1912) target = $region64
      $region63: #{mymodel_forward.1} parent=5 // pred_region
        %s1915 = ssub.s32 %s18, 2
        // Predicated region
        $region65: #{mymodel_forward.1} parent=63 // pred_check
          %p1916 = pneg %p220
        $region66: #{mymodel_forward.1} parent=63 // pred_check_branch
          %1918 = sbr.rel (%p1916) target = $region68
        $region67: #{mymodel_forward.1} parent=63 // pred_region
          %s1919 = sand.u32 %s205, 1
          %s1920 = scalar_lea.sflag [#allocation4], %s1919
          %s1921 = sand.u32 %s205, 1
          %s1922 = smul.addr %s1921, 160
          %s1923 = scalar_lea.vmem [#allocation5], %s1922
          %1924 = dma.done %s1920, 2560
        $region68: #{mymodel_forward.1} parent=63 // pred_fallthru
          _
      $region64: #{mymodel_forward.1} parent=5 // pred_fallthru
        _
    $region6: #{mymodel_forward.1} parent=1 // loop_footer
      %s22 = sadd.s32 1, %s18
    $region7: #{mymodel_forward.1} parent=1 // loop_footer_branch
      %17 = sbr.rel target = $region3
    $region8: #{mymodel_forward.1} parent=1 // loop_exit
      _
    %1925 = vsyncpa [#allocation3], 1
    %s1926 = scalar_lea.sflag [#allocation3], 1
    %1927 = vsyncpa %s1926, 1
    %1928 = vsyncpa [#allocation4], 1
    %s1929 = scalar_lea.sflag [#allocation4], 1
    %1930 = vsyncpa %s1929, 1

</llo_original>
